<compile_context>
chip_gen: v6e
topology: v6e:2x2x1
jax: 0.10.0
libtpu: 0.0.40
codegen_flags: <defaults>
</compile_context>

<pallas_src>
import math

import jax
import jax.numpy as jnp
from jax.experimental import pallas as pl
from jax.experimental.pallas import tpu as pltpu

# ---------------- model dims (small, consistent with the module's interface) -------------
B, S, H = 2, 8, 32          # batch, seq, hidden_size
NH = 4                       # attention heads
HD = H // NH                 # head dim
FF = 64                      # FFN intermediate size
CHSZ = 16                    # classifier_hsz
CAT = 4                      # categories
VOCAB = 100                  # synthetic vocab (logical)
VOCAB_PAD = 128              # vreg/MXU-aligned contraction dim for the one-hot gather
EPS = 1e-12                  # BERT layernorm eps
BN_EPS = 1e-5                # BatchNorm1d eps
NEG_INF = -1e9

# ---------------- bf16 weight-slab layout (row offsets; all multiples of 16 = bf16 tile) --
W_LANES = 128
W_TOK = 0                         # (VOCAB_PAD, H)  token embedding table
W_QKV = W_TOK + VOCAB_PAD         # (H, 3H)         fused QKV (scale folded into Q columns)
W_O = W_QKV + H                   # NH blocks of (HD, H), 16-row stride (tile-aligned)
W_O_STRIDE = 16
W_F1 = W_O + NH * W_O_STRIDE      # (H, FF)
W_F2 = W_F1 + H                   # (FF, H)
W_P = W_F2 + FF                   # (H, H)          pooler
W_C1 = W_P + H                    # (H, CHSZ)       classifier linear 1
W_C2 = W_C1 + H                   # (CHSZ, CAT)     classifier linear 2 (BN folded in)
W_ROWS = W_C2 + CHSZ              # 400 rows total (~100 KiB bf16)

# ---------------- f32 vector-slab layout (one row per bias / LN vector) ------------------
V_LANES = 128
V_POS = 0                         # rows 0..B*S-1: pre-tiled position embeddings (B*S, H)
V_EMB_G = B * S
V_EMB_B = V_EMB_G + 1
V_BQKV = V_EMB_B + 1
V_BO = V_BQKV + 1
V_LN1G = V_BO + 1
V_LN1B = V_LN1G + 1
V_BF1 = V_LN1B + 1
V_BF2 = V_BF1 + 1
V_LN2G = V_BF2 + 1
V_LN2B = V_LN2G + 1
V_BP = V_LN2B + 1
V_B1 = V_BP + 1
V_B2 = V_B1 + 1
V_ROWS = 32                       # padded to a multiple of 8 (f32 sublane tile)


# ---------------- single fused Pallas kernel: embeddings -> encoder -> pooler -> head ----
def fused_bert_kernel(ids_ref, mask_ref, w_ref, v_ref, probs_ref):
  f32 = jnp.float32
  bf16 = jnp.bfloat16

  def vrow(r, cols):
    # one f32 bias / LN vector as a (1, cols) row of the vector slab (static slice).
    return v_ref[r:r + 1, 0:cols]

  def layer_norm(x, g, b):
    mu = jnp.mean(x, axis=-1, keepdims=True)
    var = jnp.mean((x - mu) ** 2, axis=-1, keepdims=True)
    return (x - mu) * jax.lax.rsqrt(var + EPS) * g + b

  def dense(a, w, bias=None):
    # bf16 MXU inputs, f32 accumulation; elementwise math stays in f32.
    out = jnp.dot(a.astype(bf16), w, preferred_element_type=f32)
    if bias is not None:
      out = out + bias
    return out

  # --- embeddings: one-hot MXU gather over 128-padded vocab + pre-tiled pos + LayerNorm ---
  ids = ids_ref[...]                                                   # (B*S, 1) int32
  onehot = (jax.lax.broadcasted_iota(jnp.int32, (B * S, VOCAB_PAD), 1) == ids).astype(bf16)
  emb = jnp.dot(onehot, w_ref[W_TOK:W_TOK + VOCAB_PAD, 0:H],
                preferred_element_type=f32)                            # (B*S, H)
  emb = emb + v_ref[V_POS:V_POS + B * S, 0:H]                          # pre-tiled positions
  x = layer_norm(emb, vrow(V_EMB_G, H), vrow(V_EMB_B, H))              # (B*S, H)

  # --- fused QKV projection: (B*S, H) @ (H, 3H); 1/sqrt(HD) already folded into Q cols ---
  qkv = dense(x, w_ref[W_QKV:W_QKV + H, 0:3 * H], vrow(V_BQKV, 3 * H))

  # --- multi-head self-attention (heads unrolled; 3-D one-batch-dim einsums);
  #     per-head output projection accumulated from tile-aligned Wo slab blocks ---
  attn_bias = (1.0 - mask_ref[...])[:, None, :] * NEG_INF              # (B, 1, S)
  attn = jnp.zeros((B * S, H), f32)
  for h in range(NH):
    qh = qkv[:, h * HD:(h + 1) * HD].reshape(B, S, HD)
    kh = qkv[:, H + h * HD:H + (h + 1) * HD].reshape(B, S, HD)
    vh = qkv[:, 2 * H + h * HD:2 * H + (h + 1) * HD].reshape(B, S, HD)
    scores = jnp.einsum('bqd,bkd->bqk', qh.astype(bf16), kh.astype(bf16),
                        preferred_element_type=f32) + attn_bias
    m = jnp.max(scores, axis=-1, keepdims=True)
    e = jnp.exp(scores - m)
    p = e * pl.reciprocal(jnp.sum(e, axis=-1, keepdims=True), approx=True)
    ctx = jnp.einsum('bqk,bkd->bqd', p.astype(bf16), vh.astype(bf16),
                     preferred_element_type=f32).reshape(B * S, HD)
    wo_h = w_ref[W_O + h * W_O_STRIDE:W_O + h * W_O_STRIDE + HD, 0:H]  # (HD, H) slab block
    attn = attn + jnp.dot(ctx.astype(bf16), wo_h, preferred_element_type=f32)
  attn = attn + vrow(V_BO, H)
  h1 = layer_norm(x + attn, vrow(V_LN1G, H), vrow(V_LN1B, H))

  # --- feed forward (GELU) ---
  # TODO(synk): HF bert-base-chinese uses exact erf-GELU; tanh approximation used here.
  inter = jax.nn.gelu(dense(h1, w_ref[W_F1:W_F1 + H, 0:FF], vrow(V_BF1, FF)),
                      approximate=True)
  h2 = layer_norm(h1 + dense(inter, w_ref[W_F2:W_F2 + FF, 0:H], vrow(V_BF2, H)),
                  vrow(V_LN2G, H), vrow(V_LN2B, H))

  # --- pooler: tanh(CLS @ Wp + bp) ---
  cls = h2.reshape(B, S, H)[:, 0, :]                                   # (B, H)
  pooled = jnp.tanh(dense(cls, w_ref[W_P:W_P + H, 0:H], vrow(V_BP, H)))

  # --- classifier head: dropout(identity at inference) -> linear -> relu
  #     -> BatchNorm1d (folded into W_C2 / b2) -> linear -> softmax ---
  hc = jnp.maximum(dense(pooled, w_ref[W_C1:W_C1 + H, 0:CHSZ], vrow(V_B1, CHSZ)), 0.0)
  logits = dense(hc, w_ref[W_C2:W_C2 + CHSZ, 0:CAT], vrow(V_B2, CAT))  # (B, CAT)
  m2 = jnp.max(logits, axis=-1, keepdims=True)
  e2 = jnp.exp(logits - m2)
  probs_ref[...] = e2 * pl.reciprocal(jnp.sum(e2, axis=-1, keepdims=True), approx=False)


# ---------------- deterministic parameter initialization + slab packing ------------------
def xavier_normal(key, fan_in, fan_out):
  std = math.sqrt(2.0 / (fan_in + fan_out))
  return jax.random.normal(key, (fan_in, fan_out), jnp.float32) * std


def init_params(key):
  # TODO(synk): pretrained 'bert-base-chinese' weights cannot be loaded; synthetic 1-layer BERT.
  ks = jax.random.split(key, 12)
  f32 = jnp.float32
  bf16 = jnp.bfloat16

  # embeddings
  tok_emb = jax.random.normal(ks[0], (VOCAB, H), f32) * 0.02
  pos_emb = jax.random.normal(ks[1], (S, H), f32) * 0.02
  emb_ln_g = jnp.ones((H,), f32); emb_ln_b = jnp.zeros((H,), f32)
  # encoder layer: fused QKV with the 1/sqrt(HD) attention scale folded into the Q columns
  wq = xavier_normal(ks[2], H, H) * (1.0 / math.sqrt(HD))
  wk = xavier_normal(ks[3], H, H)
  wv = xavier_normal(ks[4], H, H)
  wqkv = jnp.concatenate([wq, wk, wv], axis=1)
  bqkv = jnp.zeros((3 * H,), f32)   # zero bias -> no bias fix-up needed for the folded scale
  wo = xavier_normal(ks[5], H, H)
  bo = jnp.zeros((H,), f32)
  ln1g = jnp.ones((H,), f32); ln1b = jnp.zeros((H,), f32)
  wf1 = xavier_normal(ks[6], H, FF); bf1 = jnp.zeros((FF,), f32)
  wf2 = xavier_normal(ks[7], FF, H); bf2 = jnp.zeros((H,), f32)
  ln2g = jnp.ones((H,), f32); ln2b = jnp.zeros((H,), f32)
  # pooler
  wp = xavier_normal(ks[8], H, H); bp = jnp.zeros((H,), f32)
  # classifier head (matches BertClassifier.__init__): xavier weights, zero bias, fresh BN stats
  w1 = xavier_normal(ks[9], H, CHSZ); b1 = jnp.zeros((CHSZ,), f32)
  gamma = jnp.ones((CHSZ,), f32); beta = jnp.zeros((CHSZ,), f32)
  rmean = jnp.zeros((CHSZ,), f32); rvar = jnp.ones((CHSZ,), f32)
  w2 = xavier_normal(ks[10], CHSZ, CAT); b2 = jnp.zeros((CAT,), f32)
  # fold inference BatchNorm1d into the final linear:  bn(h) @ w2 + b2 == h @ w2' + b2'
  a = gamma * jax.lax.rsqrt(rvar + BN_EPS)
  c = beta - rmean * a
  w2_eff = a[:, None] * w2
  b2_eff = c @ w2 + b2

  # --- pack one bf16 weight slab (all MXU operands) ---
  w_slab = jnp.zeros((W_ROWS, W_LANES), bf16)

  def putw(s, r0, m):
    rows, cols = m.shape
    return s.at[r0:r0 + rows, 0:cols].set(m.astype(bf16))

  w_slab = putw(w_slab, W_TOK, tok_emb)       # rows VOCAB..VOCAB_PAD-1 stay zero (padding)
  w_slab = putw(w_slab, W_QKV, wqkv)
  for h in range(NH):                         # per-head Wo blocks at 16-row aligned offsets
    w_slab = putw(w_slab, W_O + h * W_O_STRIDE, wo[h * HD:(h + 1) * HD, :])
  w_slab = putw(w_slab, W_F1, wf1)
  w_slab = putw(w_slab, W_F2, wf2)
  w_slab = putw(w_slab, W_P, wp)
  w_slab = putw(w_slab, W_C1, w1)
  w_slab = putw(w_slab, W_C2, w2_eff)

  # --- pack one f32 vector slab (pre-tiled positions + all biases / LN params) ---
  v_slab = jnp.zeros((V_ROWS, V_LANES), f32)
  v_slab = v_slab.at[V_POS:V_POS + B * S, 0:H].set(jnp.tile(pos_emb, (B, 1)))

  def putv(s, r, vec):
    return s.at[r, 0:vec.shape[0]].set(vec.astype(f32))

  v_slab = putv(v_slab, V_EMB_G, emb_ln_g); v_slab = putv(v_slab, V_EMB_B, emb_ln_b)
  v_slab = putv(v_slab, V_BQKV, bqkv)
  v_slab = putv(v_slab, V_BO, bo)
  v_slab = putv(v_slab, V_LN1G, ln1g); v_slab = putv(v_slab, V_LN1B, ln1b)
  v_slab = putv(v_slab, V_BF1, bf1); v_slab = putv(v_slab, V_BF2, bf2)
  v_slab = putv(v_slab, V_LN2G, ln2g); v_slab = putv(v_slab, V_LN2B, ln2b)
  v_slab = putv(v_slab, V_BP, bp)
  v_slab = putv(v_slab, V_B1, b1); v_slab = putv(v_slab, V_B2, b2_eff)
  return w_slab, v_slab


# ---------------- full forward (single fused pallas_call, 4 inputs) ----------------------
@jax.jit
def bert_based_model_forward(seq_ids, masks, w_slab, v_slab):
  # nn.Dropout(p=0.1) is identity at inference.
  ids2d = seq_ids.reshape(B * S, 1).astype(jnp.int32)
  return pl.pallas_call(
      fused_bert_kernel,
      out_shape=jax.ShapeDtypeStruct((B, CAT), jnp.float32),
      in_specs=[pl.BlockSpec(memory_space=pltpu.MemorySpace.VMEM)] * 4,
      out_specs=pl.BlockSpec(memory_space=pltpu.MemorySpace.VMEM),
      compiler_params=pltpu.CompilerParams(vmem_limit_bytes=32 * 1024 * 1024),
  )(ids2d, masks.astype(jnp.float32), w_slab, v_slab)


if __name__ == "__main__":
  key = jax.random.PRNGKey(0)
  k_ids, k_params = jax.random.split(key)
  seq_ids = jax.random.randint(k_ids, (B, S), 0, VOCAB, dtype=jnp.int32)
  lengths = jnp.array([S, 5], dtype=jnp.int32)
  masks = (jnp.arange(S)[None, :] < lengths[:, None]).astype(jnp.float32)   # (B, S)

  w_slab, v_slab = init_params(k_params)
  probs = bert_based_model_forward(seq_ids, masks, w_slab, v_slab)
  jax.block_until_ready(probs)

  assert probs.shape == (B, CAT)
  assert bool(jnp.all(jnp.isfinite(probs)))
  assert bool(jnp.allclose(jnp.sum(probs, axis=-1), 1.0, atol=1e-5))
  print("KERNEL_OK")
</pallas_src>

<mosaic_0001>
module attributes {stable_mosaic.version = 11 : i64} {
  func.func @fused_bert_kernel(%arg0: memref<16x1xi32, #tpu.memory_space<vmem>>, %arg1: memref<2x8xf32, #tpu.memory_space<vmem>>, %arg2: memref<400x128xbf16, #tpu.memory_space<vmem>>, %arg3: memref<32x128xf32, #tpu.memory_space<vmem>>, %arg4: memref<2x4xf32, #tpu.memory_space<vmem>>) attributes {dimension_semantics = [], scalar_prefetch = 0 : i64, scratch_operands = 0 : i64, tpu.core_type = #tpu.core_type<tc>} {
    %c0 = arith.constant 0 : index
    %c0_0 = arith.constant 0 : index
    %0 = vector.load %arg0[%c0, %c0_0] : memref<16x1xi32, #tpu.memory_space<vmem>>, vector<16x1xi32>
    %1 = tpu.iota {dimensions = array<i32: 1>} : vector<16x128xi32>
    %2 = vector.broadcast %0 : vector<16x1xi32> to vector<16x128xi32>
    %3 = arith.cmpi eq, %1, %2 : vector<16x128xi32>
    %4 = arith.extui %3 : vector<16x128xi1> to vector<16x128xi32>
    %5 = arith.sitofp %4 : vector<16x128xi32> to vector<16x128xf32>
    %6 = arith.truncf %5 : vector<16x128xf32> to vector<16x128xbf16>
    %c0_1 = arith.constant 0 : index
    %c0_2 = arith.constant 0 : index
    %7 = vector.load %arg2[%c0_1, %c0_2] : memref<400x128xbf16, #tpu.memory_space<vmem>>, vector<128x32xbf16>
    %cst = arith.constant dense<0.000000e+00> : vector<16x32xf32>
    %8 = tpu.matmul %6, %7, %cst {dimension_numbers = #tpu.dot_dimension_numbers<[1], [0], [0], [1], [0, 0, 1, 1], [], []>} : vector<16x128xbf16>, vector<128x32xbf16>, vector<16x32xf32> -> vector<16x32xf32>
    %c0_3 = arith.constant 0 : index
    %c0_4 = arith.constant 0 : index
    %9 = vector.load %arg3[%c0_3, %c0_4] : memref<32x128xf32, #tpu.memory_space<vmem>>, vector<16x32xf32>
    %10 = arith.addf %8, %9 : vector<16x32xf32>
    %c16 = arith.constant 16 : index
    %c0_5 = arith.constant 0 : index
    %11 = vector.load %arg3[%c16, %c0_5] : memref<32x128xf32, #tpu.memory_space<vmem>>, vector<1x32xf32>
    %c17 = arith.constant 17 : index
    %c0_6 = arith.constant 0 : index
    %12 = vector.load %arg3[%c17, %c0_6] : memref<32x128xf32, #tpu.memory_space<vmem>>, vector<1x32xf32>
    %cst_7 = arith.constant dense<0.000000e+00> : vector<16xf32>
    %13 = vector.multi_reduction <add>, %10, %cst_7 [1] : vector<16x32xf32> to vector<16xf32>
    %14 = vector.shape_cast %13 : vector<16xf32> to vector<16x1xf32>
    %cst_8 = arith.constant 3.200000e+01 : f32
    %15 = vector.broadcast %cst_8 : f32 to vector<16x1xf32>
    %16 = arith.divf %14, %15 : vector<16x1xf32>
    %17 = vector.broadcast %16 : vector<16x1xf32> to vector<16x32xf32>
    %18 = arith.subf %10, %17 : vector<16x32xf32>
    %19 = arith.mulf %18, %18 : vector<16x32xf32>
    %cst_9 = arith.constant dense<0.000000e+00> : vector<16xf32>
    %20 = vector.multi_reduction <add>, %19, %cst_9 [1] : vector<16x32xf32> to vector<16xf32>
    %21 = vector.shape_cast %20 : vector<16xf32> to vector<16x1xf32>
    %cst_10 = arith.constant 3.200000e+01 : f32
    %22 = vector.broadcast %cst_10 : f32 to vector<16x1xf32>
    %23 = arith.divf %21, %22 : vector<16x1xf32>
    %24 = vector.broadcast %16 : vector<16x1xf32> to vector<16x32xf32>
    %25 = arith.subf %10, %24 : vector<16x32xf32>
    %cst_11 = arith.constant 9.99999996E-13 : f32
    %26 = vector.broadcast %cst_11 : f32 to vector<16x1xf32>
    %27 = arith.addf %23, %26 : vector<16x1xf32>
    %28 = math.rsqrt %27 : vector<16x1xf32>
    %29 = vector.broadcast %28 : vector<16x1xf32> to vector<16x32xf32>
    %30 = arith.mulf %25, %29 : vector<16x32xf32>
    %31 = vector.broadcast %11 : vector<1x32xf32> to vector<16x32xf32>
    %32 = arith.mulf %30, %31 : vector<16x32xf32>
    %33 = vector.broadcast %12 : vector<1x32xf32> to vector<16x32xf32>
    %34 = arith.addf %32, %33 : vector<16x32xf32>
    %c128 = arith.constant 128 : index
    %c0_12 = arith.constant 0 : index
    %35 = vector.load %arg2[%c128, %c0_12] : memref<400x128xbf16, #tpu.memory_space<vmem>>, vector<32x96xbf16>
    %c18 = arith.constant 18 : index
    %c0_13 = arith.constant 0 : index
    %36 = vector.load %arg3[%c18, %c0_13] : memref<32x128xf32, #tpu.memory_space<vmem>>, vector<1x96xf32>
    %37 = arith.truncf %34 : vector<16x32xf32> to vector<16x32xbf16>
    %cst_14 = arith.constant dense<0.000000e+00> : vector<16x96xf32>
    %38 = tpu.matmul %37, %35, %cst_14 {dimension_numbers = #tpu.dot_dimension_numbers<[1], [0], [0], [1], [0, 0, 1, 1], [], []>} : vector<16x32xbf16>, vector<32x96xbf16>, vector<16x96xf32> -> vector<16x96xf32>
    %39 = vector.broadcast %36 : vector<1x96xf32> to vector<16x96xf32>
    %40 = arith.addf %38, %39 : vector<16x96xf32>
    %c0_15 = arith.constant 0 : index
    %c0_16 = arith.constant 0 : index
    %41 = vector.load %arg1[%c0_15, %c0_16] : memref<2x8xf32, #tpu.memory_space<vmem>>, vector<2x8xf32>
    %cst_17 = arith.constant 1.000000e+00 : f32
    %42 = vector.broadcast %cst_17 : f32 to vector<2x8xf32>
    %43 = arith.subf %42, %41 : vector<2x8xf32>
    %44 = vector.shape_cast %43 : vector<2x8xf32> to vector<2x1x8xf32>
    %cst_18 = arith.constant -1.000000e+09 : f32
    %45 = vector.broadcast %cst_18 : f32 to vector<2x1x8xf32>
    %46 = arith.mulf %44, %45 : vector<2x1x8xf32>
    %cst_19 = arith.constant 0.000000e+00 : f32
    %47 = vector.broadcast %cst_19 : f32 to vector<16x32xf32>
    %48 = vector.extract_strided_slice %40 {offsets = [0, 0], sizes = [16, 8], strides = [1, 1]} : vector<16x96xf32> to vector<16x8xf32>
    %49 = vector.shape_cast %48 : vector<16x8xf32> to vector<2x8x8xf32>
    %50 = vector.extract_strided_slice %40 {offsets = [0, 32], sizes = [16, 8], strides = [1, 1]} : vector<16x96xf32> to vector<16x8xf32>
    %51 = vector.shape_cast %50 : vector<16x8xf32> to vector<2x8x8xf32>
    %52 = vector.extract_strided_slice %40 {offsets = [0, 64], sizes = [16, 8], strides = [1, 1]} : vector<16x96xf32> to vector<16x8xf32>
    %53 = vector.shape_cast %52 : vector<16x8xf32> to vector<2x8x8xf32>
    %54 = arith.truncf %49 : vector<2x8x8xf32> to vector<2x8x8xbf16>
    %55 = arith.truncf %51 : vector<2x8x8xf32> to vector<2x8x8xbf16>
    "tpu.trace_start"() <{level = 10 : i32, message = "bqd,bkd->bqk"}> : () -> ()
    %cst_20 = arith.constant dense<0.000000e+00> : vector<2x8x8xf32>
    %56 = tpu.matmul %54, %55, %cst_20 {dimension_numbers = #tpu.dot_dimension_numbers<[2], [2], [1], [1], [0, 0, 0, 1, 1, 1], [0], [0]>} : vector<2x8x8xbf16>, vector<2x8x8xbf16>, vector<2x8x8xf32> -> vector<2x8x8xf32>
    "tpu.trace_stop"() : () -> ()
    %57 = vector.broadcast %46 : vector<2x1x8xf32> to vector<2x8x8xf32>
    %58 = arith.addf %56, %57 : vector<2x8x8xf32>
    %cst_21 = arith.constant dense<0xFF800000> : vector<2x8xf32>
    %59 = vector.multi_reduction <maximumf>, %58, %cst_21 [2] : vector<2x8x8xf32> to vector<2x8xf32>
    %60 = vector.shape_cast %59 : vector<2x8xf32> to vector<2x8x1xf32>
    %61 = vector.broadcast %60 : vector<2x8x1xf32> to vector<2x8x8xf32>
    %62 = arith.subf %58, %61 : vector<2x8x8xf32>
    %63 = math.exp %62 : vector<2x8x8xf32>
    %cst_22 = arith.constant dense<0.000000e+00> : vector<2x8xf32>
    %64 = vector.multi_reduction <add>, %63, %cst_22 [2] : vector<2x8x8xf32> to vector<2x8xf32>
    %65 = vector.shape_cast %64 : vector<2x8xf32> to vector<2x8x1xf32>
    %66 = tpu.reciprocal %65 {approx = true} : vector<2x8x1xf32> -> vector<2x8x1xf32>
    %67 = vector.broadcast %66 : vector<2x8x1xf32> to vector<2x8x8xf32>
    %68 = arith.mulf %63, %67 : vector<2x8x8xf32>
    %69 = arith.truncf %68 : vector<2x8x8xf32> to vector<2x8x8xbf16>
    %70 = arith.truncf %53 : vector<2x8x8xf32> to vector<2x8x8xbf16>
    "tpu.trace_start"() <{level = 10 : i32, message = "bqk,bkd->bqd"}> : () -> ()
    %cst_23 = arith.constant dense<0.000000e+00> : vector<2x8x8xf32>
    %71 = tpu.matmul %69, %70, %cst_23 {dimension_numbers = #tpu.dot_dimension_numbers<[2], [1], [1], [2], [0, 0, 0, 1, 1, 2], [0], [0]>} : vector<2x8x8xbf16>, vector<2x8x8xbf16>, vector<2x8x8xf32> -> vector<2x8x8xf32>
    "tpu.trace_stop"() : () -> ()
    %72 = vector.shape_cast %71 : vector<2x8x8xf32> to vector<16x8xf32>
    %c160 = arith.constant 160 : index
    %c0_24 = arith.constant 0 : index
    %73 = vector.load %arg2[%c160, %c0_24] : memref<400x128xbf16, #tpu.memory_space<vmem>>, vector<8x32xbf16>
    %74 = arith.truncf %72 : vector<16x8xf32> to vector<16x8xbf16>
    %cst_25 = arith.constant dense<0.000000e+00> : vector<16x32xf32>
    %75 = tpu.matmul %74, %73, %cst_25 {dimension_numbers = #tpu.dot_dimension_numbers<[1], [0], [0], [1], [0, 0, 1, 1], [], []>} : vector<16x8xbf16>, vector<8x32xbf16>, vector<16x32xf32> -> vector<16x32xf32>
    %76 = arith.addf %47, %75 : vector<16x32xf32>
    %77 = vector.extract_strided_slice %40 {offsets = [0, 8], sizes = [16, 8], strides = [1, 1]} : vector<16x96xf32> to vector<16x8xf32>
    %78 = vector.shape_cast %77 : vector<16x8xf32> to vector<2x8x8xf32>
    %79 = vector.extract_strided_slice %40 {offsets = [0, 40], sizes = [16, 8], strides = [1, 1]} : vector<16x96xf32> to vector<16x8xf32>
    %80 = vector.shape_cast %79 : vector<16x8xf32> to vector<2x8x8xf32>
    %81 = vector.extract_strided_slice %40 {offsets = [0, 72], sizes = [16, 8], strides = [1, 1]} : vector<16x96xf32> to vector<16x8xf32>
    %82 = vector.shape_cast %81 : vector<16x8xf32> to vector<2x8x8xf32>
    %83 = arith.truncf %78 : vector<2x8x8xf32> to vector<2x8x8xbf16>
    %84 = arith.truncf %80 : vector<2x8x8xf32> to vector<2x8x8xbf16>
    "tpu.trace_start"() <{level = 10 : i32, message = "bqd,bkd->bqk"}> : () -> ()
    %cst_26 = arith.constant dense<0.000000e+00> : vector<2x8x8xf32>
    %85 = tpu.matmul %83, %84, %cst_26 {dimension_numbers = #tpu.dot_dimension_numbers<[2], [2], [1], [1], [0, 0, 0, 1, 1, 1], [0], [0]>} : vector<2x8x8xbf16>, vector<2x8x8xbf16>, vector<2x8x8xf32> -> vector<2x8x8xf32>
    "tpu.trace_stop"() : () -> ()
    %86 = vector.broadcast %46 : vector<2x1x8xf32> to vector<2x8x8xf32>
    %87 = arith.addf %85, %86 : vector<2x8x8xf32>
    %cst_27 = arith.constant dense<0xFF800000> : vector<2x8xf32>
    %88 = vector.multi_reduction <maximumf>, %87, %cst_27 [2] : vector<2x8x8xf32> to vector<2x8xf32>
    %89 = vector.shape_cast %88 : vector<2x8xf32> to vector<2x8x1xf32>
    %90 = vector.broadcast %89 : vector<2x8x1xf32> to vector<2x8x8xf32>
    %91 = arith.subf %87, %90 : vector<2x8x8xf32>
    %92 = math.exp %91 : vector<2x8x8xf32>
    %cst_28 = arith.constant dense<0.000000e+00> : vector<2x8xf32>
    %93 = vector.multi_reduction <add>, %92, %cst_28 [2] : vector<2x8x8xf32> to vector<2x8xf32>
    %94 = vector.shape_cast %93 : vector<2x8xf32> to vector<2x8x1xf32>
    %95 = tpu.reciprocal %94 {approx = true} : vector<2x8x1xf32> -> vector<2x8x1xf32>
    %96 = vector.broadcast %95 : vector<2x8x1xf32> to vector<2x8x8xf32>
    %97 = arith.mulf %92, %96 : vector<2x8x8xf32>
    %98 = arith.truncf %97 : vector<2x8x8xf32> to vector<2x8x8xbf16>
    %99 = arith.truncf %82 : vector<2x8x8xf32> to vector<2x8x8xbf16>
    "tpu.trace_start"() <{level = 10 : i32, message = "bqk,bkd->bqd"}> : () -> ()
    %cst_29 = arith.constant dense<0.000000e+00> : vector<2x8x8xf32>
    %100 = tpu.matmul %98, %99, %cst_29 {dimension_numbers = #tpu.dot_dimension_numbers<[2], [1], [1], [2], [0, 0, 0, 1, 1, 2], [0], [0]>} : vector<2x8x8xbf16>, vector<2x8x8xbf16>, vector<2x8x8xf32> -> vector<2x8x8xf32>
    "tpu.trace_stop"() : () -> ()
    %101 = vector.shape_cast %100 : vector<2x8x8xf32> to vector<16x8xf32>
    %c176 = arith.constant 176 : index
    %c0_30 = arith.constant 0 : index
    %102 = vector.load %arg2[%c176, %c0_30] : memref<400x128xbf16, #tpu.memory_space<vmem>>, vector<8x32xbf16>
    %103 = arith.truncf %101 : vector<16x8xf32> to vector<16x8xbf16>
    %cst_31 = arith.constant dense<0.000000e+00> : vector<16x32xf32>
    %104 = tpu.matmul %103, %102, %cst_31 {dimension_numbers = #tpu.dot_dimension_numbers<[1], [0], [0], [1], [0, 0, 1, 1], [], []>} : vector<16x8xbf16>, vector<8x32xbf16>, vector<16x32xf32> -> vector<16x32xf32>
    %105 = arith.addf %76, %104 : vector<16x32xf32>
    %106 = vector.extract_strided_slice %40 {offsets = [0, 16], sizes = [16, 8], strides = [1, 1]} : vector<16x96xf32> to vector<16x8xf32>
    %107 = vector.shape_cast %106 : vector<16x8xf32> to vector<2x8x8xf32>
    %108 = vector.extract_strided_slice %40 {offsets = [0, 48], sizes = [16, 8], strides = [1, 1]} : vector<16x96xf32> to vector<16x8xf32>
    %109 = vector.shape_cast %108 : vector<16x8xf32> to vector<2x8x8xf32>
    %110 = vector.extract_strided_slice %40 {offsets = [0, 80], sizes = [16, 8], strides = [1, 1]} : vector<16x96xf32> to vector<16x8xf32>
    %111 = vector.shape_cast %110 : vector<16x8xf32> to vector<2x8x8xf32>
    %112 = arith.truncf %107 : vector<2x8x8xf32> to vector<2x8x8xbf16>
    %113 = arith.truncf %109 : vector<2x8x8xf32> to vector<2x8x8xbf16>
    "tpu.trace_start"() <{level = 10 : i32, message = "bqd,bkd->bqk"}> : () -> ()
    %cst_32 = arith.constant dense<0.000000e+00> : vector<2x8x8xf32>
    %114 = tpu.matmul %112, %113, %cst_32 {dimension_numbers = #tpu.dot_dimension_numbers<[2], [2], [1], [1], [0, 0, 0, 1, 1, 1], [0], [0]>} : vector<2x8x8xbf16>, vector<2x8x8xbf16>, vector<2x8x8xf32> -> vector<2x8x8xf32>
    "tpu.trace_stop"() : () -> ()
    %115 = vector.broadcast %46 : vector<2x1x8xf32> to vector<2x8x8xf32>
    %116 = arith.addf %114, %115 : vector<2x8x8xf32>
    %cst_33 = arith.constant dense<0xFF800000> : vector<2x8xf32>
    %117 = vector.multi_reduction <maximumf>, %116, %cst_33 [2] : vector<2x8x8xf32> to vector<2x8xf32>
    %118 = vector.shape_cast %117 : vector<2x8xf32> to vector<2x8x1xf32>
    %119 = vector.broadcast %118 : vector<2x8x1xf32> to vector<2x8x8xf32>
    %120 = arith.subf %116, %119 : vector<2x8x8xf32>
    %121 = math.exp %120 : vector<2x8x8xf32>
    %cst_34 = arith.constant dense<0.000000e+00> : vector<2x8xf32>
    %122 = vector.multi_reduction <add>, %121, %cst_34 [2] : vector<2x8x8xf32> to vector<2x8xf32>
    %123 = vector.shape_cast %122 : vector<2x8xf32> to vector<2x8x1xf32>
    %124 = tpu.reciprocal %123 {approx = true} : vector<2x8x1xf32> -> vector<2x8x1xf32>
    %125 = vector.broadcast %124 : vector<2x8x1xf32> to vector<2x8x8xf32>
    %126 = arith.mulf %121, %125 : vector<2x8x8xf32>
    %127 = arith.truncf %126 : vector<2x8x8xf32> to vector<2x8x8xbf16>
    %128 = arith.truncf %111 : vector<2x8x8xf32> to vector<2x8x8xbf16>
    "tpu.trace_start"() <{level = 10 : i32, message = "bqk,bkd->bqd"}> : () -> ()
    %cst_35 = arith.constant dense<0.000000e+00> : vector<2x8x8xf32>
    %129 = tpu.matmul %127, %128, %cst_35 {dimension_numbers = #tpu.dot_dimension_numbers<[2], [1], [1], [2], [0, 0, 0, 1, 1, 2], [0], [0]>} : vector<2x8x8xbf16>, vector<2x8x8xbf16>, vector<2x8x8xf32> -> vector<2x8x8xf32>
    "tpu.trace_stop"() : () -> ()
    %130 = vector.shape_cast %129 : vector<2x8x8xf32> to vector<16x8xf32>
    %c192 = arith.constant 192 : index
    %c0_36 = arith.constant 0 : index
    %131 = vector.load %arg2[%c192, %c0_36] : memref<400x128xbf16, #tpu.memory_space<vmem>>, vector<8x32xbf16>
    %132 = arith.truncf %130 : vector<16x8xf32> to vector<16x8xbf16>
    %cst_37 = arith.constant dense<0.000000e+00> : vector<16x32xf32>
    %133 = tpu.matmul %132, %131, %cst_37 {dimension_numbers = #tpu.dot_dimension_numbers<[1], [0], [0], [1], [0, 0, 1, 1], [], []>} : vector<16x8xbf16>, vector<8x32xbf16>, vector<16x32xf32> -> vector<16x32xf32>
    %134 = arith.addf %105, %133 : vector<16x32xf32>
    %135 = vector.extract_strided_slice %40 {offsets = [0, 24], sizes = [16, 8], strides = [1, 1]} : vector<16x96xf32> to vector<16x8xf32>
    %136 = vector.shape_cast %135 : vector<16x8xf32> to vector<2x8x8xf32>
    %137 = vector.extract_strided_slice %40 {offsets = [0, 56], sizes = [16, 8], strides = [1, 1]} : vector<16x96xf32> to vector<16x8xf32>
    %138 = vector.shape_cast %137 : vector<16x8xf32> to vector<2x8x8xf32>
    %139 = vector.extract_strided_slice %40 {offsets = [0, 88], sizes = [16, 8], strides = [1, 1]} : vector<16x96xf32> to vector<16x8xf32>
    %140 = vector.shape_cast %139 : vector<16x8xf32> to vector<2x8x8xf32>
    %141 = arith.truncf %136 : vector<2x8x8xf32> to vector<2x8x8xbf16>
    %142 = arith.truncf %138 : vector<2x8x8xf32> to vector<2x8x8xbf16>
    "tpu.trace_start"() <{level = 10 : i32, message = "bqd,bkd->bqk"}> : () -> ()
    %cst_38 = arith.constant dense<0.000000e+00> : vector<2x8x8xf32>
    %143 = tpu.matmul %141, %142, %cst_38 {dimension_numbers = #tpu.dot_dimension_numbers<[2], [2], [1], [1], [0, 0, 0, 1, 1, 1], [0], [0]>} : vector<2x8x8xbf16>, vector<2x8x8xbf16>, vector<2x8x8xf32> -> vector<2x8x8xf32>
    "tpu.trace_stop"() : () -> ()
    %144 = vector.broadcast %46 : vector<2x1x8xf32> to vector<2x8x8xf32>
    %145 = arith.addf %143, %144 : vector<2x8x8xf32>
    %cst_39 = arith.constant dense<0xFF800000> : vector<2x8xf32>
    %146 = vector.multi_reduction <maximumf>, %145, %cst_39 [2] : vector<2x8x8xf32> to vector<2x8xf32>
    %147 = vector.shape_cast %146 : vector<2x8xf32> to vector<2x8x1xf32>
    %148 = vector.broadcast %147 : vector<2x8x1xf32> to vector<2x8x8xf32>
    %149 = arith.subf %145, %148 : vector<2x8x8xf32>
    %150 = math.exp %149 : vector<2x8x8xf32>
    %cst_40 = arith.constant dense<0.000000e+00> : vector<2x8xf32>
    %151 = vector.multi_reduction <add>, %150, %cst_40 [2] : vector<2x8x8xf32> to vector<2x8xf32>
    %152 = vector.shape_cast %151 : vector<2x8xf32> to vector<2x8x1xf32>
    %153 = tpu.reciprocal %152 {approx = true} : vector<2x8x1xf32> -> vector<2x8x1xf32>
    %154 = vector.broadcast %153 : vector<2x8x1xf32> to vector<2x8x8xf32>
    %155 = arith.mulf %150, %154 : vector<2x8x8xf32>
    %156 = arith.truncf %155 : vector<2x8x8xf32> to vector<2x8x8xbf16>
    %157 = arith.truncf %140 : vector<2x8x8xf32> to vector<2x8x8xbf16>
    "tpu.trace_start"() <{level = 10 : i32, message = "bqk,bkd->bqd"}> : () -> ()
    %cst_41 = arith.constant dense<0.000000e+00> : vector<2x8x8xf32>
    %158 = tpu.matmul %156, %157, %cst_41 {dimension_numbers = #tpu.dot_dimension_numbers<[2], [1], [1], [2], [0, 0, 0, 1, 1, 2], [0], [0]>} : vector<2x8x8xbf16>, vector<2x8x8xbf16>, vector<2x8x8xf32> -> vector<2x8x8xf32>
    "tpu.trace_stop"() : () -> ()
    %159 = vector.shape_cast %158 : vector<2x8x8xf32> to vector<16x8xf32>
    %c208 = arith.constant 208 : index
    %c0_42 = arith.constant 0 : index
    %160 = vector.load %arg2[%c208, %c0_42] : memref<400x128xbf16, #tpu.memory_space<vmem>>, vector<8x32xbf16>
    %161 = arith.truncf %159 : vector<16x8xf32> to vector<16x8xbf16>
    %cst_43 = arith.constant dense<0.000000e+00> : vector<16x32xf32>
    %162 = tpu.matmul %161, %160, %cst_43 {dimension_numbers = #tpu.dot_dimension_numbers<[1], [0], [0], [1], [0, 0, 1, 1], [], []>} : vector<16x8xbf16>, vector<8x32xbf16>, vector<16x32xf32> -> vector<16x32xf32>
    %163 = arith.addf %134, %162 : vector<16x32xf32>
    %c19 = arith.constant 19 : index
    %c0_44 = arith.constant 0 : index
    %164 = vector.load %arg3[%c19, %c0_44] : memref<32x128xf32, #tpu.memory_space<vmem>>, vector<1x32xf32>
    %165 = vector.broadcast %164 : vector<1x32xf32> to vector<16x32xf32>
    %166 = arith.addf %163, %165 : vector<16x32xf32>
    %167 = arith.addf %34, %166 : vector<16x32xf32>
    %c20 = arith.constant 20 : index
    %c0_45 = arith.constant 0 : index
    %168 = vector.load %arg3[%c20, %c0_45] : memref<32x128xf32, #tpu.memory_space<vmem>>, vector<1x32xf32>
    %c21 = arith.constant 21 : index
    %c0_46 = arith.constant 0 : index
    %169 = vector.load %arg3[%c21, %c0_46] : memref<32x128xf32, #tpu.memory_space<vmem>>, vector<1x32xf32>
    %cst_47 = arith.constant dense<0.000000e+00> : vector<16xf32>
    %170 = vector.multi_reduction <add>, %167, %cst_47 [1] : vector<16x32xf32> to vector<16xf32>
    %171 = vector.shape_cast %170 : vector<16xf32> to vector<16x1xf32>
    %cst_48 = arith.constant 3.200000e+01 : f32
    %172 = vector.broadcast %cst_48 : f32 to vector<16x1xf32>
    %173 = arith.divf %171, %172 : vector<16x1xf32>
    %174 = vector.broadcast %173 : vector<16x1xf32> to vector<16x32xf32>
    %175 = arith.subf %167, %174 : vector<16x32xf32>
    %176 = arith.mulf %175, %175 : vector<16x32xf32>
    %cst_49 = arith.constant dense<0.000000e+00> : vector<16xf32>
    %177 = vector.multi_reduction <add>, %176, %cst_49 [1] : vector<16x32xf32> to vector<16xf32>
    %178 = vector.shape_cast %177 : vector<16xf32> to vector<16x1xf32>
    %cst_50 = arith.constant 3.200000e+01 : f32
    %179 = vector.broadcast %cst_50 : f32 to vector<16x1xf32>
    %180 = arith.divf %178, %179 : vector<16x1xf32>
    %181 = vector.broadcast %173 : vector<16x1xf32> to vector<16x32xf32>
    %182 = arith.subf %167, %181 : vector<16x32xf32>
    %cst_51 = arith.constant 9.99999996E-13 : f32
    %183 = vector.broadcast %cst_51 : f32 to vector<16x1xf32>
    %184 = arith.addf %180, %183 : vector<16x1xf32>
    %185 = math.rsqrt %184 : vector<16x1xf32>
    %186 = vector.broadcast %185 : vector<16x1xf32> to vector<16x32xf32>
    %187 = arith.mulf %182, %186 : vector<16x32xf32>
    %188 = vector.broadcast %168 : vector<1x32xf32> to vector<16x32xf32>
    %189 = arith.mulf %187, %188 : vector<16x32xf32>
    %190 = vector.broadcast %169 : vector<1x32xf32> to vector<16x32xf32>
    %191 = arith.addf %189, %190 : vector<16x32xf32>
    %c224 = arith.constant 224 : index
    %c0_52 = arith.constant 0 : index
    %192 = vector.load %arg2[%c224, %c0_52] : memref<400x128xbf16, #tpu.memory_space<vmem>>, vector<32x64xbf16>
    %c22 = arith.constant 22 : index
    %c0_53 = arith.constant 0 : index
    %193 = vector.load %arg3[%c22, %c0_53] : memref<32x128xf32, #tpu.memory_space<vmem>>, vector<1x64xf32>
    %194 = arith.truncf %191 : vector<16x32xf32> to vector<16x32xbf16>
    %cst_54 = arith.constant dense<0.000000e+00> : vector<16x64xf32>
    %195 = tpu.matmul %194, %192, %cst_54 {dimension_numbers = #tpu.dot_dimension_numbers<[1], [0], [0], [1], [0, 0, 1, 1], [], []>} : vector<16x32xbf16>, vector<32x64xbf16>, vector<16x64xf32> -> vector<16x64xf32>
    %196 = vector.broadcast %193 : vector<1x64xf32> to vector<16x64xf32>
    %197 = arith.addf %195, %196 : vector<16x64xf32>
    %198 = arith.mulf %197, %197 : vector<16x64xf32>
    %199 = arith.mulf %197, %198 : vector<16x64xf32>
    %cst_55 = arith.constant 4.471500e-02 : f32
    %200 = vector.broadcast %cst_55 : f32 to vector<16x64xf32>
    %201 = arith.mulf %200, %199 : vector<16x64xf32>
    %202 = arith.addf %197, %201 : vector<16x64xf32>
    %cst_56 = arith.constant 0.797884583 : f32
    %203 = vector.broadcast %cst_56 : f32 to vector<16x64xf32>
    %204 = arith.mulf %203, %202 : vector<16x64xf32>
    %205 = math.tanh %204 : vector<16x64xf32>
    %cst_57 = arith.constant 1.000000e+00 : f32
    %206 = vector.broadcast %cst_57 : f32 to vector<16x64xf32>
    %207 = arith.addf %206, %205 : vector<16x64xf32>
    %cst_58 = arith.constant 5.000000e-01 : f32
    %208 = vector.broadcast %cst_58 : f32 to vector<16x64xf32>
    %209 = arith.mulf %208, %207 : vector<16x64xf32>
    %210 = arith.mulf %197, %209 : vector<16x64xf32>
    %c256 = arith.constant 256 : index
    %c0_59 = arith.constant 0 : index
    %211 = vector.load %arg2[%c256, %c0_59] : memref<400x128xbf16, #tpu.memory_space<vmem>>, vector<64x32xbf16>
    %c23 = arith.constant 23 : index
    %c0_60 = arith.constant 0 : index
    %212 = vector.load %arg3[%c23, %c0_60] : memref<32x128xf32, #tpu.memory_space<vmem>>, vector<1x32xf32>
    %213 = arith.truncf %210 : vector<16x64xf32> to vector<16x64xbf16>
    %cst_61 = arith.constant dense<0.000000e+00> : vector<16x32xf32>
    %214 = tpu.matmul %213, %211, %cst_61 {dimension_numbers = #tpu.dot_dimension_numbers<[1], [0], [0], [1], [0, 0, 1, 1], [], []>} : vector<16x64xbf16>, vector<64x32xbf16>, vector<16x32xf32> -> vector<16x32xf32>
    %215 = vector.broadcast %212 : vector<1x32xf32> to vector<16x32xf32>
    %216 = arith.addf %214, %215 : vector<16x32xf32>
    %217 = arith.addf %191, %216 : vector<16x32xf32>
    %c24 = arith.constant 24 : index
    %c0_62 = arith.constant 0 : index
    %218 = vector.load %arg3[%c24, %c0_62] : memref<32x128xf32, #tpu.memory_space<vmem>>, vector<1x32xf32>
    %c25 = arith.constant 25 : index
    %c0_63 = arith.constant 0 : index
    %219 = vector.load %arg3[%c25, %c0_63] : memref<32x128xf32, #tpu.memory_space<vmem>>, vector<1x32xf32>
    %cst_64 = arith.constant dense<0.000000e+00> : vector<16xf32>
    %220 = vector.multi_reduction <add>, %217, %cst_64 [1] : vector<16x32xf32> to vector<16xf32>
    %221 = vector.shape_cast %220 : vector<16xf32> to vector<16x1xf32>
    %cst_65 = arith.constant 3.200000e+01 : f32
    %222 = vector.broadcast %cst_65 : f32 to vector<16x1xf32>
    %223 = arith.divf %221, %222 : vector<16x1xf32>
    %224 = vector.broadcast %223 : vector<16x1xf32> to vector<16x32xf32>
    %225 = arith.subf %217, %224 : vector<16x32xf32>
    %226 = arith.mulf %225, %225 : vector<16x32xf32>
    %cst_66 = arith.constant dense<0.000000e+00> : vector<16xf32>
    %227 = vector.multi_reduction <add>, %226, %cst_66 [1] : vector<16x32xf32> to vector<16xf32>
    %228 = vector.shape_cast %227 : vector<16xf32> to vector<16x1xf32>
    %cst_67 = arith.constant 3.200000e+01 : f32
    %229 = vector.broadcast %cst_67 : f32 to vector<16x1xf32>
    %230 = arith.divf %228, %229 : vector<16x1xf32>
    %231 = vector.broadcast %223 : vector<16x1xf32> to vector<16x32xf32>
    %232 = arith.subf %217, %231 : vector<16x32xf32>
    %cst_68 = arith.constant 9.99999996E-13 : f32
    %233 = vector.broadcast %cst_68 : f32 to vector<16x1xf32>
    %234 = arith.addf %230, %233 : vector<16x1xf32>
    %235 = math.rsqrt %234 : vector<16x1xf32>
    %236 = vector.broadcast %235 : vector<16x1xf32> to vector<16x32xf32>
    %237 = arith.mulf %232, %236 : vector<16x32xf32>
    %238 = vector.broadcast %218 : vector<1x32xf32> to vector<16x32xf32>
    %239 = arith.mulf %237, %238 : vector<16x32xf32>
    %240 = vector.broadcast %219 : vector<1x32xf32> to vector<16x32xf32>
    %241 = arith.addf %239, %240 : vector<16x32xf32>
    %242 = vector.shape_cast %241 : vector<16x32xf32> to vector<2x8x32xf32>
    %243 = vector.extract_strided_slice %242 {offsets = [0, 0, 0], sizes = [2, 1, 32], strides = [1, 1, 1]} : vector<2x8x32xf32> to vector<2x1x32xf32>
    %244 = vector.shape_cast %243 : vector<2x1x32xf32> to vector<2x32xf32>
    %c320 = arith.constant 320 : index
    %c0_69 = arith.constant 0 : index
    %245 = vector.load %arg2[%c320, %c0_69] : memref<400x128xbf16, #tpu.memory_space<vmem>>, vector<32x32xbf16>
    %c26 = arith.constant 26 : index
    %c0_70 = arith.constant 0 : index
    %246 = vector.load %arg3[%c26, %c0_70] : memref<32x128xf32, #tpu.memory_space<vmem>>, vector<1x32xf32>
    %247 = arith.truncf %244 : vector<2x32xf32> to vector<2x32xbf16>
    %cst_71 = arith.constant dense<0.000000e+00> : vector<2x32xf32>
    %248 = tpu.matmul %247, %245, %cst_71 {dimension_numbers = #tpu.dot_dimension_numbers<[1], [0], [0], [1], [0, 0, 1, 1], [], []>} : vector<2x32xbf16>, vector<32x32xbf16>, vector<2x32xf32> -> vector<2x32xf32>
    %249 = vector.broadcast %246 : vector<1x32xf32> to vector<2x32xf32>
    %250 = arith.addf %248, %249 : vector<2x32xf32>
    %251 = math.tanh %250 : vector<2x32xf32>
    %c352 = arith.constant 352 : index
    %c0_72 = arith.constant 0 : index
    %252 = vector.load %arg2[%c352, %c0_72] : memref<400x128xbf16, #tpu.memory_space<vmem>>, vector<32x16xbf16>
    %c27 = arith.constant 27 : index
    %c0_73 = arith.constant 0 : index
    %253 = vector.load %arg3[%c27, %c0_73] : memref<32x128xf32, #tpu.memory_space<vmem>>, vector<1x16xf32>
    %254 = arith.truncf %251 : vector<2x32xf32> to vector<2x32xbf16>
    %cst_74 = arith.constant dense<0.000000e+00> : vector<2x16xf32>
    %255 = tpu.matmul %254, %252, %cst_74 {dimension_numbers = #tpu.dot_dimension_numbers<[1], [0], [0], [1], [0, 0, 1, 1], [], []>} : vector<2x32xbf16>, vector<32x16xbf16>, vector<2x16xf32> -> vector<2x16xf32>
    %256 = vector.broadcast %253 : vector<1x16xf32> to vector<2x16xf32>
    %257 = arith.addf %255, %256 : vector<2x16xf32>
    %cst_75 = arith.constant 0.000000e+00 : f32
    %258 = vector.broadcast %cst_75 : f32 to vector<2x16xf32>
    %259 = arith.maximumf %257, %258 : vector<2x16xf32>
    %c384 = arith.constant 384 : index
    %c0_76 = arith.constant 0 : index
    %260 = vector.load %arg2[%c384, %c0_76] : memref<400x128xbf16, #tpu.memory_space<vmem>>, vector<16x4xbf16>
    %c28 = arith.constant 28 : index
    %c0_77 = arith.constant 0 : index
    %261 = vector.load %arg3[%c28, %c0_77] : memref<32x128xf32, #tpu.memory_space<vmem>>, vector<1x4xf32>
    %262 = arith.truncf %259 : vector<2x16xf32> to vector<2x16xbf16>
    %cst_78 = arith.constant dense<0.000000e+00> : vector<2x4xf32>
    %263 = tpu.matmul %262, %260, %cst_78 {dimension_numbers = #tpu.dot_dimension_numbers<[1], [0], [0], [1], [0, 0, 1, 1], [], []>} : vector<2x16xbf16>, vector<16x4xbf16>, vector<2x4xf32> -> vector<2x4xf32>
    %264 = vector.broadcast %261 : vector<1x4xf32> to vector<2x4xf32>
    %265 = arith.addf %263, %264 : vector<2x4xf32>
    %cst_79 = arith.constant dense<0xFF800000> : vector<2xf32>
    %266 = vector.multi_reduction <maximumf>, %265, %cst_79 [1] : vector<2x4xf32> to vector<2xf32>
    %267 = vector.shape_cast %266 : vector<2xf32> to vector<2x1xf32>
    %268 = vector.broadcast %267 : vector<2x1xf32> to vector<2x4xf32>
    %269 = arith.subf %265, %268 : vector<2x4xf32>
    %270 = math.exp %269 : vector<2x4xf32>
    %cst_80 = arith.constant dense<0.000000e+00> : vector<2xf32>
    %271 = vector.multi_reduction <add>, %270, %cst_80 [1] : vector<2x4xf32> to vector<2xf32>
    %272 = vector.shape_cast %271 : vector<2xf32> to vector<2x1xf32>
    %273 = tpu.reciprocal %272 : vector<2x1xf32> -> vector<2x1xf32>
    %274 = vector.broadcast %273 : vector<2x1xf32> to vector<2x4xf32>
    %275 = arith.mulf %270, %274 : vector<2x4xf32>
    %c0_81 = arith.constant 0 : index
    %c0_82 = arith.constant 0 : index
    %276 = vector.load %arg4[%c0_81, %c0_82] : memref<2x4xf32, #tpu.memory_space<vmem>>, vector<2x4xf32>
    tpu.vector_store %arg4[%c0_81, %c0_82], %275 {strides = array<i32>} : memref<2x4xf32, #tpu.memory_space<vmem>>, vector<2x4xf32>,
    return
  }
}

</mosaic_0001>

<llo_original>
// kernel: bert_based_model_forward.1
$region0: #{bert_based_model_forward.1}
  #allocation0 [shape = 'u32[]', space=smem, size = 0x4, offset = 0x4, fixed_abs, tag = 'smem constant byte address 0x4 - core index']
  #allocation1 [shape = 'u32[144,128]{1,0:T(1,128)}', space=vmem, size = 0x12000, scoped, tag = 'internal scratch']
  %s0 = inlined_call_operand.vmem [shape: s32[16,1], index: 0, kind: input, shape index: {}]
  %s1 = inlined_call_operand.vmem [shape: f32[2,8], index: 1, kind: input, shape index: {}]
  %s2 = inlined_call_operand.hbm [shape: bf16[400,128], index: 2, kind: input, shape index: {}]
  %s3 = inlined_call_operand.hbm [shape: f32[32,128], index: 3, kind: input, shape index: {}]
  %s4 = inlined_call_operand.hbm [shape: f32[2,4], index: 4, kind: output, shape index: {}]
  %s5 = sld [smem:[#allocation0]]
  $region34: #{bert_based_model_forward.1} parent=0
    _
  %s7 = ssub.s32 1, %s5
  %s8 = scalar_select 0, %s7, %s5
  $region1: #{bert_based_model_forward.1} parent=0
    #allocation2 [shape = 'u8[102400]{0}', space=vmem, size = 0x19000, scoped, tag = 'input window, operand 2, single buffered']
    #allocation3 [shape = 's32[1]{0}', space=sflag, size = 0x4, scoped, tag = 'scoped memory for bert_based_model_forward.1']
    #allocation4 [shape = 's32[1]{0}', space=sflag, size = 0x4, scoped, tag = 'scoped memory for bert_based_model_forward.1']
    #allocation5 [shape = 'u8[16384]{0}', space=vmem, size = 0x4000, scoped, tag = 'input window, operand 3, single buffered']
    #allocation6 [shape = 's32[1]{0}', space=sflag, size = 0x4, scoped, tag = 'scoped memory for bert_based_model_forward.1']
    #allocation7 [shape = 'u8[1024]{0}', space=vmem, size = 0x400, scoped, tag = 'output window, operand 0, single buffered']
    %9 = vsyncpa [#allocation3], 0
    %10 = vsyncpa [#allocation6], 0
    %11 = vsyncpa [#allocation4], 0
    // Predicated region
    $region2: #{bert_based_model_forward.1} parent=1 // pred_check
      _
    $region3: #{bert_based_model_forward.1} parent=1 // pred_check_branch
      %13 = sbr.rel (0) target = $region5
    $region4: #{bert_based_model_forward.1} parent=1 // pred_region
      _
    $region5: #{bert_based_model_forward.1} parent=1 // pred_fallthru
      _
    // Predicated region
    $region6: #{bert_based_model_forward.1} parent=1 // pred_check
      _
    $region7: #{bert_based_model_forward.1} parent=1 // pred_check_branch
      %15 = sbr.rel (0) target = $region9
    $region8: #{bert_based_model_forward.1} parent=1 // pred_region
      _
    $region9: #{bert_based_model_forward.1} parent=1 // pred_fallthru
      _
    // Predicated region
    $region10: #{bert_based_model_forward.1} parent=1 // pred_check
      _
    $region11: #{bert_based_model_forward.1} parent=1 // pred_check_branch
      %17 = sbr.rel (0) target = $region13
    $region12: #{bert_based_model_forward.1} parent=1 // pred_region
      %s19 = ssub.s32 3200, 3200
      %20 = vsyncadd [#allocation3], %s19
      %s21 = sshll.u32 [#allocation2], 4
      %s22 = int_to_ptr.vmem [resolvable:$true] %s21
      %27 = dma.hbm_to_vmem [thread:$0]  %s2, 3200, %s22, [#allocation3], 64, 64, 4
    $region13: #{bert_based_model_forward.1} parent=1 // pred_fallthru
      _
    // Predicated region
    $region14: #{bert_based_model_forward.1} parent=1 // pred_check
      _
    $region15: #{bert_based_model_forward.1} parent=1 // pred_check_branch
      %29 = sbr.rel (0) target = $region17
    $region16: #{bert_based_model_forward.1} parent=1 // pred_region
      %s31 = ssub.s32 512, 512
      %32 = vsyncadd [#allocation6], %s31
      %s33 = sshll.u32 [#allocation5], 4
      %s34 = int_to_ptr.vmem [resolvable:$true] %s33
      %39 = dma.hbm_to_vmem [thread:$0]  %s3, 512, %s34, [#allocation6], 128, 128, 8
    $region17: #{bert_based_model_forward.1} parent=1 // pred_fallthru
      _
    // Predicated region
    $region18: #{bert_based_model_forward.1} parent=1 // pred_check
      _
    $region19: #{bert_based_model_forward.1} parent=1 // pred_check_branch
      %41 = sbr.rel (0) target = $region21
    $region20: #{bert_based_model_forward.1} parent=1 // pred_region
      %42 = dma.done [#allocation3], 3200
    $region21: #{bert_based_model_forward.1} parent=1 // pred_fallthru
      _
    // Predicated region
    $region22: #{bert_based_model_forward.1} parent=1 // pred_check
      _
    $region23: #{bert_based_model_forward.1} parent=1 // pred_check_branch
      %44 = sbr.rel (0) target = $region25
    $region24: #{bert_based_model_forward.1} parent=1 // pred_region
      %45 = dma.done [#allocation6], 512
    $region25: #{bert_based_model_forward.1} parent=1 // pred_fallthru
      _
    %v47 = vld [vmem:[%s0] sm:$0xff]
    %v48 = vld [vmem:[%s0 + $0x8] sm:$0xff]
    %v49 = vlaneseq
    %v50 = vand.u32 %v49, 127
    %51 = vset.pattern.permute.xlu0 0
    %52 = vperm.xlu0 %51, %v47
    %v53 = vpop.permute.xlu0 %52
    %54 = vset.pattern.permute.xlu0 0
    %55 = vperm.xlu0 %54, %v48
    %v56 = vpop.permute.xlu0 %55
    %vm57 = vcmp.eq.s32.totalorder %v50, %v53
    %vm58 = vcmp.eq.s32.totalorder %v50, %v56
    %v59 = vsel %vm57, 1, 0
    %v60 = vsel %vm58, 1, 0
    %v61 = vcvt.s32.f32 %v59
    %v62 = vcvt.s32.f32 %v60
    %v63 = vpack.c.bf16 %v62, %v61
    %v64 = vld [vmem:[#allocation2] sm:$0xf]
    %v65 = vld [vmem:[#allocation2 + $0x4] sm:$0xf]
    %v66 = vld [vmem:[#allocation2 + $0x8] sm:$0xf]
    %v67 = vld [vmem:[#allocation2 + $0xc] sm:$0xf]
    %v68 = vld [vmem:[#allocation2 + $0x10] sm:$0xf]
    %v69 = vld [vmem:[#allocation2 + $0x14] sm:$0xf]
    %v70 = vld [vmem:[#allocation2 + $0x18] sm:$0xf]
    %v71 = vld [vmem:[#allocation2 + $0x1c] sm:$0xf]
    %v72 = vld [vmem:[#allocation2 + $0x20] sm:$0xf]
    %v73 = vld [vmem:[#allocation2 + $0x24] sm:$0xf]
    %v74 = vld [vmem:[#allocation2 + $0x28] sm:$0xf]
    %v75 = vld [vmem:[#allocation2 + $0x2c] sm:$0xf]
    %v76 = vld [vmem:[#allocation2 + $0x30] sm:$0xf]
    %v77 = vld [vmem:[#allocation2 + $0x34] sm:$0xf]
    %v78 = vld [vmem:[#allocation2 + $0x38] sm:$0xf]
    %v79 = vld [vmem:[#allocation2 + $0x3c] sm:$0xf]
    %v80 = vld [vmem:[#allocation5] sm:$0xff]
    %v81 = vld [vmem:[#allocation5 + $0x8] sm:$0xff]
    %v98 = vunpack.c.l.b16 %v64
    %v99 = vunpack.c.l.b16 %v65
    %v100 = vunpack.c.l.b16 %v66
    %v101 = vunpack.c.l.b16 %v67
    %v102 = vunpack.c.l.b16 %v68
    %v103 = vunpack.c.l.b16 %v69
    %v104 = vunpack.c.l.b16 %v70
    %v105 = vunpack.c.l.b16 %v71
    %v106 = vunpack.c.l.b16 %v72
    %v107 = vunpack.c.l.b16 %v73
    %v108 = vunpack.c.l.b16 %v74
    %v109 = vunpack.c.l.b16 %v75
    %v110 = vunpack.c.l.b16 %v76
    %v111 = vunpack.c.l.b16 %v77
    %v112 = vunpack.c.l.b16 %v78
    %v113 = vunpack.c.l.b16 %v79
    %v114 = vpack.c.b16 %v99, %v98
    %v115 = vpack.c.b16 %v101, %v100
    %v116 = vpack.c.b16 %v103, %v102
    %v117 = vpack.c.b16 %v105, %v104
    %v118 = vpack.c.b16 %v107, %v106
    %v119 = vpack.c.b16 %v109, %v108
    %v120 = vpack.c.b16 %v111, %v110
    %v121 = vpack.c.b16 %v113, %v112
    %130 = vmatprep.subr.bf16.mxu0 0
    %131 = vmatpush1.bf16.msra.mxu0 %v121
    %132 = vmatprep.subr.bf16.mxu0 0
    %133 = vmatpush1.bf16.msra.mxu0 %v120
    %134 = vmatprep.subr.bf16.mxu0 0
    %135 = vmatpush1.bf16.msra.mxu0 %v119
    %136 = vmatprep.subr.bf16.mxu0 0
    %137 = vmatpush1.bf16.msra.mxu0 %v118
    %138 = vmatprep.subr.bf16.mxu0 0
    %139 = vmatpush1.bf16.msra.mxu0 %v117
    %140 = vmatprep.subr.bf16.mxu0 0
    %141 = vmatpush1.bf16.msra.mxu0 %v116
    %142 = vmatprep.subr.bf16.mxu0 0
    %143 = vmatpush1.bf16.msra.mxu0 %v115
    %144 = vmatprep.subr.bf16.mxu0 0
    %145 = vmatpush1.bf16.msra.mxu0 %v114
    %146 = vmatprep.subr.bf16.mxu0 0
    %147 = vmatpush2.bf16.msra.mxu0 0
    %148 = vmatprep.subr.bf16.mxu0 0
    %149 = vmatpush2.bf16.msra.mxu0 0
    %150 = vmatprep.subr.bf16.mxu0 0
    %151 = vmatpush2.bf16.msra.mxu0 0
    %152 = vmatprep.subr.bf16.mxu0 0
    %153 = vmatpush2.bf16.msra.mxu0 0
    %154 = vmatprep.subr.bf16.mxu0 0
    %155 = vmatpush2.bf16.msra.mxu0 0
    %156 = vmatprep.subr.bf16.mxu0 0
    %157 = vmatpush2.bf16.msra.mxu0 0
    %158 = vmatprep.subr.bf16.mxu0 0
    %159 = vmatpush2.bf16.msra.mxu0 0
    %160 = vmatprep.subr.bf16.mxu0 0
    %161 = vmatpush2.bf16.msra.mxu0 0
    %162 = vmatprep.mubr.bf16.mxu0 0
    %163 = vmatmul.mubr.bf16.gmra.mxu0 %v63
    %v164 = vpop.f32.mrf.mxu0
    %v165 = vadd.f32 %v80, %v164
    %v166 = vpop.f32.mrf.mxu0
    %v167 = vpop.f32.mrf.mxu0
    %v168 = vadd.f32 %v81, %v167
    %v169 = vpop.f32.mrf.mxu0
    %170 = vdwg.mxu0
    %v171 = vld [vmem:[#allocation5 + $0x10] sm:$0x1]
    %v172 = vld [vmem:[#allocation5 + $0x11] sm:$0x1]
    %vm173 = vcmask 261120
    %v174 = vsel %vm173, %v165, 0.0
    %175 = vadd.xlane.f32.xlu0 %v174
    %v176 = vpop.xlane.xlu0 %175
    %v177 = vsel %vm173, %v168, 0.0
    %178 = vadd.xlane.f32.xlu0 %v177
    %v179 = vpop.xlane.xlu0 %178
    %v180 = vrcp.pop 32.0
    %v181 = vmul.f32 %v176, %v180
    %v182 = vmul.f32 %v179, %v180
    %v183 = vsub.f32 %v165, %v181
    %v184 = vsub.f32 %v168, %v182
    %v185 = vmul.f32 %v183, %v183
    %v186 = vmul.f32 %v184, %v184
    %v187 = vsel %vm173, %v185, 0.0
    %188 = vadd.xlane.f32.xlu0 %v187
    %v189 = vpop.xlane.xlu0 %188
    %v190 = vsel %vm173, %v186, 0.0
    %191 = vadd.xlane.f32.xlu0 %v190
    %v192 = vpop.xlane.xlu0 %191
    %v193 = vmul.f32 %v189, %v180
    %v194 = vmul.f32 %v192, %v180
    %v195 = vadd.f32 %v193, 1e-12
    %v196 = vadd.f32 %v194, 1e-12
    %v197 = vrsqrt.pop %v195
    %v198 = vrsqrt.pop %v196
    %v199 = vmul.f32 %v183, %v197
    %v200 = vmul.f32 %v184, %v198
    %v201 = vlaneseq
    %v202 = vshrl.u32 %v201, 7
    %v203 = vsub.s32 0, %v202
    %v204 = vrot.slane %v171, %v203
    %v205 = vmul.f32 %v199, %v204
    %v206 = vmul.f32 %v200, %v204
    %v207 = vlaneseq
    %v208 = vshrl.u32 %v207, 7
    %v209 = vsub.s32 0, %v208
    %v210 = vrot.slane %v172, %v209
    %v211 = vadd.f32 %v205, %v210
    %v212 = vadd.f32 %v206, %v210
    %v213 = vld [vmem:[#allocation2 + $0x40] sm:$0xf]
    %v214 = vld [vmem:[#allocation2 + $0x44] sm:$0xf]
    %v215 = vld [vmem:[#allocation2 + $0x48] sm:$0xf]
    %v216 = vld [vmem:[#allocation2 + $0x4c] sm:$0xf]
    %v217 = vld [vmem:[#allocation5 + $0x12] sm:$0x1]
    %v218 = vpack.c.bf16 %v212, %v211
    %v219 = vlaneseq
    %v220 = vshrl.u32 %v219, 7
    %v221 = vsub.s32 0, %v220
    %v222 = vrot.slane %v217, %v221
    %v227 = vunpack.c.l.b16 %v213
    %v228 = vunpack.c.l.b16 %v214
    %v229 = vunpack.c.l.b16 %v215
    %v230 = vunpack.c.l.b16 %v216
    %v231 = vpack.c.b16 %v228, %v227
    %v232 = vpack.c.b16 %v230, %v229
    %v236 = vsel %vm173, %v218, 0
    %238 = vmatprep.subr.bf16.mxu0 0
    %239 = vmatpush1.bf16.msra.mxu0 0
    %240 = vmatprep.subr.bf16.mxu0 0
    %241 = vmatpush1.bf16.msra.mxu0 0
    %242 = vmatprep.subr.bf16.mxu0 0
    %243 = vmatpush1.bf16.msra.mxu0 0
    %244 = vmatprep.subr.bf16.mxu0 0
    %245 = vmatpush1.bf16.msra.mxu0 0
    %246 = vmatprep.subr.bf16.mxu0 0
    %247 = vmatpush1.bf16.msra.mxu0 0
    %248 = vmatprep.subr.bf16.mxu0 0
    %249 = vmatpush1.bf16.msra.mxu0 0
    %250 = vmatprep.subr.bf16.mxu0 0
    %251 = vmatpush1.bf16.msra.mxu0 %v232
    %252 = vmatprep.subr.bf16.mxu0 0
    %253 = vmatpush1.bf16.msra.mxu0 %v231
    %254 = vmatprep.subr.bf16.mxu0 0
    %255 = vmatpush2.bf16.msra.mxu0 0
    %256 = vmatprep.subr.bf16.mxu0 0
    %257 = vmatpush2.bf16.msra.mxu0 0
    %258 = vmatprep.subr.bf16.mxu0 0
    %259 = vmatpush2.bf16.msra.mxu0 0
    %260 = vmatprep.subr.bf16.mxu0 0
    %261 = vmatpush2.bf16.msra.mxu0 0
    %262 = vmatprep.subr.bf16.mxu0 0
    %263 = vmatpush2.bf16.msra.mxu0 0
    %264 = vmatprep.subr.bf16.mxu0 0
    %265 = vmatpush2.bf16.msra.mxu0 0
    %266 = vmatprep.subr.bf16.mxu0 0
    %267 = vmatpush2.bf16.msra.mxu0 0
    %268 = vmatprep.subr.bf16.mxu0 0
    %269 = vmatpush2.bf16.msra.mxu0 0
    %270 = vmatprep.mubr.bf16.mxu0 0
    %271 = vmatmul.mubr.bf16.gmra.mxu0 %v236
    %v272 = vpop.f32.mrf.mxu0
    %v273 = vadd.f32 %v222, %v272
    %v274 = vpop.f32.mrf.mxu0
    %v275 = vpop.f32.mrf.mxu0
    %v276 = vadd.f32 %v222, %v275
    %v277 = vpop.f32.mrf.mxu0
    %278 = vdwg.mxu0
    %v279 = vld [vmem:[%s1] sm:$0x3]
    %v280 = vsub.f32 1.0, %v279
    %v283 = vunpack.c.l.s4 1966171168
    %v284 = vunpack.c.0.s8 %v283
    %v285 = vlaneseq
    %v286 = vshrl.u32 %v285, 7
    %v287 = vsub.s32 %v284, %v286
    %v288 = vrot.slane %v280, %v287
    %v289 = vcombine.high %v288, %v288
    %v291 = vunpack.c.l.s4 1966171168
    %v292 = vunpack.c.0.s8 %v291
    %v293 = vlaneseq
    %v294 = vshrl.u32 %v293, 7
    %v295 = vsub.s32 %v292, %v294
    %v296 = vrot.slane %v288, %v295
    %v298 = vunpack.c.l.s4 1966171168
    %v299 = vunpack.c.0.s8 %v298
    %v300 = vlaneseq
    %v301 = vshrl.u32 %v300, 7
    %v302 = vsub.s32 %v299, %v301
    %v303 = vrot.slane %v289, %v302
    %v306 = vmul.f32 %v296, -1e+09
    %v307 = vmul.f32 %v303, -1e+09
    %v308 = vpack.c.bf16 %v273, %v273
    %v309 = vpack.c.bf16 %v276, %v276
    %v312 = vlaneseq
    %v313 = vshrl.u32 %v312, 7
    %v314 = vsub.s32 0, %v313
    %v315 = vrot.slane %v306, %v314
    %v316 = vlaneseq
    %v317 = vshrl.u32 %v316, 7
    %v318 = vsub.s32 0, %v317
    %v319 = vrot.slane %v307, %v318
    %323 = vrot.lane.b32.xlu0 %v308, 96
    %v324 = vpop.permute.xlu0 %323
    %vm325 = vcmask 64512
    %v327 = vsel %vm325, %v308, 0
    %v330 = vsel %vm325, %v324, 0
    %332 = vmatprep.subr.bf16.mxu0 0
    %333 = vmatpush1.bf16.xpose.msra.mxu0 0
    %334 = vmatprep.subr.bf16.mxu0 0
    %335 = vmatpush1.bf16.xpose.msra.mxu0 0
    %336 = vmatprep.subr.bf16.mxu0 0
    %337 = vmatpush1.bf16.xpose.msra.mxu0 0
    %338 = vmatprep.subr.bf16.mxu0 0
    %339 = vmatpush1.bf16.xpose.msra.mxu0 0
    %340 = vmatprep.subr.bf16.mxu0 0
    %341 = vmatpush1.bf16.xpose.msra.mxu0 0
    %342 = vmatprep.subr.bf16.mxu0 0
    %343 = vmatpush1.bf16.xpose.msra.mxu0 0
    %344 = vmatprep.subr.bf16.mxu0 0
    %345 = vmatpush1.bf16.xpose.msra.mxu0 0
    %346 = vmatprep.subr.bf16.mxu0 0
    %347 = vmatpush1.bf16.xpose.msra.mxu0 %v330
    %348 = vmatprep.subr.bf16.mxu0 0
    %349 = vmatpush2.bf16.xpose.msra.mxu0 0
    %350 = vmatprep.subr.bf16.mxu0 0
    %351 = vmatpush2.bf16.xpose.msra.mxu0 0
    %352 = vmatprep.subr.bf16.mxu0 0
    %353 = vmatpush2.bf16.xpose.msra.mxu0 0
    %354 = vmatprep.subr.bf16.mxu0 0
    %355 = vmatpush2.bf16.xpose.msra.mxu0 0
    %356 = vmatprep.subr.bf16.mxu0 0
    %357 = vmatpush2.bf16.xpose.msra.mxu0 0
    %358 = vmatprep.subr.bf16.mxu0 0
    %359 = vmatpush2.bf16.xpose.msra.mxu0 0
    %360 = vmatprep.subr.bf16.mxu0 0
    %361 = vmatpush2.bf16.xpose.msra.mxu0 0
    %362 = vmatprep.subr.bf16.mxu0 0
    %363 = vmatpush2.bf16.xpose.msra.mxu0 0
    %364 = vmatprep.mubr.bf16.mxu0 0
    %365 = vmatmul.mubr.bf16.gmra.mxu0 %v327
    %v366 = vpop.f32.mrf.mxu0
    %v367 = vadd.f32 %v315, %v366
    %v368 = vpop.f32.mrf.mxu0
    %v369 = vpop.f32.mrf.mxu0
    %v370 = vpop.f32.mrf.mxu0
    %371 = vdwg.mxu0
    %373 = vrot.lane.b32.xlu0 %v309, 96
    %v374 = vpop.permute.xlu0 %373
    %v376 = vsel %vm325, %v309, 0
    %v379 = vsel %vm325, %v374, 0
    %381 = vmatprep.subr.bf16.mxu0 0
    %382 = vmatpush1.bf16.xpose.msra.mxu0 0
    %383 = vmatprep.subr.bf16.mxu0 0
    %384 = vmatpush1.bf16.xpose.msra.mxu0 0
    %385 = vmatprep.subr.bf16.mxu0 0
    %386 = vmatpush1.bf16.xpose.msra.mxu0 0
    %387 = vmatprep.subr.bf16.mxu0 0
    %388 = vmatpush1.bf16.xpose.msra.mxu0 0
    %389 = vmatprep.subr.bf16.mxu0 0
    %390 = vmatpush1.bf16.xpose.msra.mxu0 0
    %391 = vmatprep.subr.bf16.mxu0 0
    %392 = vmatpush1.bf16.xpose.msra.mxu0 0
    %393 = vmatprep.subr.bf16.mxu0 0
    %394 = vmatpush1.bf16.xpose.msra.mxu0 0
    %395 = vmatprep.subr.bf16.mxu0 0
    %396 = vmatpush1.bf16.xpose.msra.mxu0 %v379
    %397 = vmatprep.subr.bf16.mxu0 0
    %398 = vmatpush2.bf16.xpose.msra.mxu0 0
    %399 = vmatprep.subr.bf16.mxu0 0
    %400 = vmatpush2.bf16.xpose.msra.mxu0 0
    %401 = vmatprep.subr.bf16.mxu0 0
    %402 = vmatpush2.bf16.xpose.msra.mxu0 0
    %403 = vmatprep.subr.bf16.mxu0 0
    %404 = vmatpush2.bf16.xpose.msra.mxu0 0
    %405 = vmatprep.subr.bf16.mxu0 0
    %406 = vmatpush2.bf16.xpose.msra.mxu0 0
    %407 = vmatprep.subr.bf16.mxu0 0
    %408 = vmatpush2.bf16.xpose.msra.mxu0 0
    %409 = vmatprep.subr.bf16.mxu0 0
    %410 = vmatpush2.bf16.xpose.msra.mxu0 0
    %411 = vmatprep.subr.bf16.mxu0 0
    %412 = vmatpush2.bf16.xpose.msra.mxu0 0
    %413 = vmatprep.mubr.bf16.mxu0 0
    %414 = vmatmul.mubr.bf16.gmra.mxu0 %v376
    %v415 = vpop.f32.mrf.mxu0
    %v416 = vadd.f32 %v319, %v415
    %v417 = vpop.f32.mrf.mxu0
    %v418 = vpop.f32.mrf.mxu0
    %v419 = vpop.f32.mrf.mxu0
    %420 = vdwg.mxu0
    %v421 = vsel %vm325, %v367, -inf
    %422 = vmax.xlane.f32.xlu0 %v421
    %v423 = vpop.xlane.xlu0 %422
    %v424 = vsel %vm325, %v416, -inf
    %425 = vmax.xlane.f32.xlu0 %v424
    %v426 = vpop.xlane.xlu0 %425
    %v427 = vsub.f32 %v367, %v423
    %v428 = vsub.f32 %v416, %v426
    %v429 = vmul.f32 %v427, 1.442695
    %v430 = vpow.pop %v429
    %v431 = vmul.f32 %v428, 1.442695
    %v432 = vpow.pop %v431
    %v433 = vsel %vm325, %v430, 0.0
    %434 = vadd.xlane.f32.xlu0 %v433
    %v435 = vpop.xlane.xlu0 %434
    %v436 = vsel %vm325, %v432, 0.0
    %437 = vadd.xlane.f32.xlu0 %v436
    %v438 = vpop.xlane.xlu0 %437
    %v439 = vrcp.pop %v435
    %v440 = vrcp.pop %v438
    %v441 = vmul.f32 %v430, %v439
    %v442 = vmul.f32 %v432, %v440
    %v443 = vpack.c.bf16 %v441, %v441
    %v444 = vpack.c.bf16 %v442, %v442
    %445 = vrot.lane.b32.xlu0 %v308, 64
    %v446 = vpop.permute.xlu0 %445
    %v448 = vsel %vm325, %v443, 0
    %vm450 = vcmask 1043456
    %v452 = vsel %vm450, %v446, 0
    %454 = vmatprep.subr.bf16.mxu0 0
    %455 = vmatpush1.bf16.msra.mxu0 0
    %456 = vmatprep.subr.bf16.mxu0 0
    %457 = vmatpush1.bf16.msra.mxu0 0
    %458 = vmatprep.subr.bf16.mxu0 0
    %459 = vmatpush1.bf16.msra.mxu0 0
    %460 = vmatprep.subr.bf16.mxu0 0
    %461 = vmatpush1.bf16.msra.mxu0 0
    %462 = vmatprep.subr.bf16.mxu0 0
    %463 = vmatpush1.bf16.msra.mxu0 0
    %464 = vmatprep.subr.bf16.mxu0 0
    %465 = vmatpush1.bf16.msra.mxu0 0
    %466 = vmatprep.subr.bf16.mxu0 0
    %467 = vmatpush1.bf16.msra.mxu0 0
    %468 = vmatprep.subr.bf16.mxu0 0
    %469 = vmatpush1.bf16.msra.mxu0 %v452
    %470 = vmatprep.subr.bf16.mxu0 0
    %471 = vmatpush2.bf16.msra.mxu0 0
    %472 = vmatprep.subr.bf16.mxu0 0
    %473 = vmatpush2.bf16.msra.mxu0 0
    %474 = vmatprep.subr.bf16.mxu0 0
    %475 = vmatpush2.bf16.msra.mxu0 0
    %476 = vmatprep.subr.bf16.mxu0 0
    %477 = vmatpush2.bf16.msra.mxu0 0
    %478 = vmatprep.subr.bf16.mxu0 0
    %479 = vmatpush2.bf16.msra.mxu0 0
    %480 = vmatprep.subr.bf16.mxu0 0
    %481 = vmatpush2.bf16.msra.mxu0 0
    %482 = vmatprep.subr.bf16.mxu0 0
    %483 = vmatpush2.bf16.msra.mxu0 0
    %484 = vmatprep.subr.bf16.mxu0 0
    %485 = vmatpush2.bf16.msra.mxu0 0
    %486 = vmatprep.mubr.bf16.mxu0 0
    %487 = vmatmul.mubr.bf16.gmra.mxu0 %v448
    %v488 = vpop.f32.mrf.mxu0
    %v489 = vadd.f32 0.0, %v488
    %v490 = vpop.f32.mrf.mxu0
    %v491 = vpop.f32.mrf.mxu0
    %v492 = vpop.f32.mrf.mxu0
    %493 = vdwg.mxu0
    %494 = vrot.lane.b32.xlu0 %v309, 64
    %v495 = vpop.permute.xlu0 %494
    %v497 = vsel %vm325, %v444, 0
    %v500 = vsel %vm450, %v495, 0
    %502 = vmatprep.subr.bf16.mxu0 0
    %503 = vmatpush1.bf16.msra.mxu0 0
    %504 = vmatprep.subr.bf16.mxu0 0
    %505 = vmatpush1.bf16.msra.mxu0 0
    %506 = vmatprep.subr.bf16.mxu0 0
    %507 = vmatpush1.bf16.msra.mxu0 0
    %508 = vmatprep.subr.bf16.mxu0 0
    %509 = vmatpush1.bf16.msra.mxu0 0
    %510 = vmatprep.subr.bf16.mxu0 0
    %511 = vmatpush1.bf16.msra.mxu0 0
    %512 = vmatprep.subr.bf16.mxu0 0
    %513 = vmatpush1.bf16.msra.mxu0 0
    %514 = vmatprep.subr.bf16.mxu0 0
    %515 = vmatpush1.bf16.msra.mxu0 0
    %516 = vmatprep.subr.bf16.mxu0 0
    %517 = vmatpush1.bf16.msra.mxu0 %v500
    %518 = vmatprep.subr.bf16.mxu0 0
    %519 = vmatpush2.bf16.msra.mxu0 0
    %520 = vmatprep.subr.bf16.mxu0 0
    %521 = vmatpush2.bf16.msra.mxu0 0
    %522 = vmatprep.subr.bf16.mxu0 0
    %523 = vmatpush2.bf16.msra.mxu0 0
    %524 = vmatprep.subr.bf16.mxu0 0
    %525 = vmatpush2.bf16.msra.mxu0 0
    %526 = vmatprep.subr.bf16.mxu0 0
    %527 = vmatpush2.bf16.msra.mxu0 0
    %528 = vmatprep.subr.bf16.mxu0 0
    %529 = vmatpush2.bf16.msra.mxu0 0
    %530 = vmatprep.subr.bf16.mxu0 0
    %531 = vmatpush2.bf16.msra.mxu0 0
    %532 = vmatprep.subr.bf16.mxu0 0
    %533 = vmatpush2.bf16.msra.mxu0 0
    %534 = vmatprep.mubr.bf16.mxu0 0
    %535 = vmatmul.mubr.bf16.gmra.mxu0 %v497
    %v536 = vpop.f32.mrf.mxu0
    %v537 = vadd.f32 0.0, %v536
    %v538 = vpop.f32.mrf.mxu0
    %v539 = vpop.f32.mrf.mxu0
    %v540 = vpop.f32.mrf.mxu0
    %541 = vdwg.mxu0
    %v542 = vld [vmem:[#allocation2 + $0x50] sm:$0xf]
    %v543 = vpack.c.bf16 %v537, %v489
    %544 = vrot.lane.b32.xlu0 %v308, 120
    %v545 = vpop.permute.xlu0 %544
    %546 = vrot.lane.b32.xlu0 %v308, 88
    %v547 = vpop.permute.xlu0 %546
    %v549 = vsel %vm325, %v545, 0
    %v552 = vsel %vm325, %v547, 0
    %554 = vmatprep.subr.bf16.mxu0 0
    %555 = vmatpush1.bf16.xpose.msra.mxu0 0
    %556 = vmatprep.subr.bf16.mxu0 0
    %557 = vmatpush1.bf16.xpose.msra.mxu0 0
    %558 = vmatprep.subr.bf16.mxu0 0
    %559 = vmatpush1.bf16.xpose.msra.mxu0 0
    %560 = vmatprep.subr.bf16.mxu0 0
    %561 = vmatpush1.bf16.xpose.msra.mxu0 0
    %562 = vmatprep.subr.bf16.mxu0 0
    %563 = vmatpush1.bf16.xpose.msra.mxu0 0
    %564 = vmatprep.subr.bf16.mxu0 0
    %565 = vmatpush1.bf16.xpose.msra.mxu0 0
    %566 = vmatprep.subr.bf16.mxu0 0
    %567 = vmatpush1.bf16.xpose.msra.mxu0 0
    %568 = vmatprep.subr.bf16.mxu0 0
    %569 = vmatpush1.bf16.xpose.msra.mxu0 %v552
    %570 = vmatprep.subr.bf16.mxu0 0
    %571 = vmatpush2.bf16.xpose.msra.mxu0 0
    %572 = vmatprep.subr.bf16.mxu0 0
    %573 = vmatpush2.bf16.xpose.msra.mxu0 0
    %574 = vmatprep.subr.bf16.mxu0 0
    %575 = vmatpush2.bf16.xpose.msra.mxu0 0
    %576 = vmatprep.subr.bf16.mxu0 0
    %577 = vmatpush2.bf16.xpose.msra.mxu0 0
    %578 = vmatprep.subr.bf16.mxu0 0
    %579 = vmatpush2.bf16.xpose.msra.mxu0 0
    %580 = vmatprep.subr.bf16.mxu0 0
    %581 = vmatpush2.bf16.xpose.msra.mxu0 0
    %582 = vmatprep.subr.bf16.mxu0 0
    %583 = vmatpush2.bf16.xpose.msra.mxu0 0
    %584 = vmatprep.subr.bf16.mxu0 0
    %585 = vmatpush2.bf16.xpose.msra.mxu0 0
    %586 = vmatprep.mubr.bf16.mxu0 0
    %587 = vmatmul.mubr.bf16.gmra.mxu0 %v549
    %v588 = vpop.f32.mrf.mxu0
    %v589 = vadd.f32 %v315, %v588
    %v590 = vpop.f32.mrf.mxu0
    %v591 = vpop.f32.mrf.mxu0
    %v592 = vpop.f32.mrf.mxu0
    %593 = vdwg.mxu0
    %594 = vrot.lane.b32.xlu0 %v309, 120
    %v595 = vpop.permute.xlu0 %594
    %596 = vrot.lane.b32.xlu0 %v309, 88
    %v597 = vpop.permute.xlu0 %596
    %v599 = vsel %vm325, %v595, 0
    %v602 = vsel %vm325, %v597, 0
    %604 = vmatprep.subr.bf16.mxu0 0
    %605 = vmatpush1.bf16.xpose.msra.mxu0 0
    %606 = vmatprep.subr.bf16.mxu0 0
    %607 = vmatpush1.bf16.xpose.msra.mxu0 0
    %608 = vmatprep.subr.bf16.mxu0 0
    %609 = vmatpush1.bf16.xpose.msra.mxu0 0
    %610 = vmatprep.subr.bf16.mxu0 0
    %611 = vmatpush1.bf16.xpose.msra.mxu0 0
    %612 = vmatprep.subr.bf16.mxu0 0
    %613 = vmatpush1.bf16.xpose.msra.mxu0 0
    %614 = vmatprep.subr.bf16.mxu0 0
    %615 = vmatpush1.bf16.xpose.msra.mxu0 0
    %616 = vmatprep.subr.bf16.mxu0 0
    %617 = vmatpush1.bf16.xpose.msra.mxu0 0
    %618 = vmatprep.subr.bf16.mxu0 0
    %619 = vmatpush1.bf16.xpose.msra.mxu0 %v602
    %620 = vmatprep.subr.bf16.mxu0 0
    %621 = vmatpush2.bf16.xpose.msra.mxu0 0
    %622 = vmatprep.subr.bf16.mxu0 0
    %623 = vmatpush2.bf16.xpose.msra.mxu0 0
    %624 = vmatprep.subr.bf16.mxu0 0
    %625 = vmatpush2.bf16.xpose.msra.mxu0 0
    %626 = vmatprep.subr.bf16.mxu0 0
    %627 = vmatpush2.bf16.xpose.msra.mxu0 0
    %628 = vmatprep.subr.bf16.mxu0 0
    %629 = vmatpush2.bf16.xpose.msra.mxu0 0
    %630 = vmatprep.subr.bf16.mxu0 0
    %631 = vmatpush2.bf16.xpose.msra.mxu0 0
    %632 = vmatprep.subr.bf16.mxu0 0
    %633 = vmatpush2.bf16.xpose.msra.mxu0 0
    %634 = vmatprep.subr.bf16.mxu0 0
    %635 = vmatpush2.bf16.xpose.msra.mxu0 0
    %636 = vmatprep.mubr.bf16.mxu0 0
    %637 = vmatmul.mubr.bf16.gmra.mxu0 %v599
    %v638 = vpop.f32.mrf.mxu0
    %v639 = vadd.f32 %v319, %v638
    %v640 = vpop.f32.mrf.mxu0
    %v641 = vpop.f32.mrf.mxu0
    %v642 = vpop.f32.mrf.mxu0
    %643 = vdwg.mxu0
    %v644 = vsel %vm325, %v589, -inf
    %645 = vmax.xlane.f32.xlu0 %v644
    %v646 = vpop.xlane.xlu0 %645
    %v647 = vsel %vm325, %v639, -inf
    %648 = vmax.xlane.f32.xlu0 %v647
    %v649 = vpop.xlane.xlu0 %648
    %v650 = vsub.f32 %v589, %v646
    %v651 = vsub.f32 %v639, %v649
    %v652 = vmul.f32 %v650, 1.442695
    %v653 = vpow.pop %v652
    %v654 = vmul.f32 %v651, 1.442695
    %v655 = vpow.pop %v654
    %v656 = vsel %vm325, %v653, 0.0
    %657 = vadd.xlane.f32.xlu0 %v656
    %v658 = vpop.xlane.xlu0 %657
    %v659 = vsel %vm325, %v655, 0.0
    %660 = vadd.xlane.f32.xlu0 %v659
    %v661 = vpop.xlane.xlu0 %660
    %v662 = vrcp.pop %v658
    %v663 = vrcp.pop %v661
    %v664 = vmul.f32 %v653, %v662
    %v665 = vmul.f32 %v655, %v663
    %v666 = vpack.c.bf16 %v664, %v664
    %v667 = vpack.c.bf16 %v665, %v665
    %668 = vrot.lane.b32.xlu0 %v308, 56
    %v669 = vpop.permute.xlu0 %668
    %v671 = vsel %vm325, %v666, 0
    %v674 = vsel %vm450, %v669, 0
    %676 = vmatprep.subr.bf16.mxu0 0
    %677 = vmatpush1.bf16.msra.mxu0 0
    %678 = vmatprep.subr.bf16.mxu0 0
    %679 = vmatpush1.bf16.msra.mxu0 0
    %680 = vmatprep.subr.bf16.mxu0 0
    %681 = vmatpush1.bf16.msra.mxu0 0
    %682 = vmatprep.subr.bf16.mxu0 0
    %683 = vmatpush1.bf16.msra.mxu0 0
    %684 = vmatprep.subr.bf16.mxu0 0
    %685 = vmatpush1.bf16.msra.mxu0 0
    %686 = vmatprep.subr.bf16.mxu0 0
    %687 = vmatpush1.bf16.msra.mxu0 0
    %688 = vmatprep.subr.bf16.mxu0 0
    %689 = vmatpush1.bf16.msra.mxu0 0
    %690 = vmatprep.subr.bf16.mxu0 0
    %691 = vmatpush1.bf16.msra.mxu0 %v674
    %692 = vmatprep.subr.bf16.mxu0 0
    %693 = vmatpush2.bf16.msra.mxu0 0
    %694 = vmatprep.subr.bf16.mxu0 0
    %695 = vmatpush2.bf16.msra.mxu0 0
    %696 = vmatprep.subr.bf16.mxu0 0
    %697 = vmatpush2.bf16.msra.mxu0 0
    %698 = vmatprep.subr.bf16.mxu0 0
    %699 = vmatpush2.bf16.msra.mxu0 0
    %700 = vmatprep.subr.bf16.mxu0 0
    %701 = vmatpush2.bf16.msra.mxu0 0
    %702 = vmatprep.subr.bf16.mxu0 0
    %703 = vmatpush2.bf16.msra.mxu0 0
    %704 = vmatprep.subr.bf16.mxu0 0
    %705 = vmatpush2.bf16.msra.mxu0 0
    %706 = vmatprep.subr.bf16.mxu0 0
    %707 = vmatpush2.bf16.msra.mxu0 0
    %708 = vmatprep.mubr.bf16.mxu0 0
    %709 = vmatmul.mubr.bf16.gmra.mxu0 %v671
    %v710 = vpop.f32.mrf.mxu0
    %v711 = vadd.f32 0.0, %v710
    %v712 = vpop.f32.mrf.mxu0
    %v713 = vpop.f32.mrf.mxu0
    %v714 = vpop.f32.mrf.mxu0
    %715 = vdwg.mxu0
    %716 = vrot.lane.b32.xlu0 %v309, 56
    %v717 = vpop.permute.xlu0 %716
    %v719 = vsel %vm325, %v667, 0
    %v722 = vsel %vm450, %v717, 0
    %724 = vmatprep.subr.bf16.mxu0 0
    %725 = vmatpush1.bf16.msra.mxu0 0
    %726 = vmatprep.subr.bf16.mxu0 0
    %727 = vmatpush1.bf16.msra.mxu0 0
    %728 = vmatprep.subr.bf16.mxu0 0
    %729 = vmatpush1.bf16.msra.mxu0 0
    %730 = vmatprep.subr.bf16.mxu0 0
    %731 = vmatpush1.bf16.msra.mxu0 0
    %732 = vmatprep.subr.bf16.mxu0 0
    %733 = vmatpush1.bf16.msra.mxu0 0
    %734 = vmatprep.subr.bf16.mxu0 0
    %735 = vmatpush1.bf16.msra.mxu0 0
    %736 = vmatprep.subr.bf16.mxu0 0
    %737 = vmatpush1.bf16.msra.mxu0 0
    %738 = vmatprep.subr.bf16.mxu0 0
    %739 = vmatpush1.bf16.msra.mxu0 %v722
    %740 = vmatprep.subr.bf16.mxu0 0
    %741 = vmatpush2.bf16.msra.mxu0 0
    %742 = vmatprep.subr.bf16.mxu0 0
    %743 = vmatpush2.bf16.msra.mxu0 0
    %744 = vmatprep.subr.bf16.mxu0 0
    %745 = vmatpush2.bf16.msra.mxu0 0
    %746 = vmatprep.subr.bf16.mxu0 0
    %747 = vmatpush2.bf16.msra.mxu0 0
    %748 = vmatprep.subr.bf16.mxu0 0
    %749 = vmatpush2.bf16.msra.mxu0 0
    %750 = vmatprep.subr.bf16.mxu0 0
    %751 = vmatpush2.bf16.msra.mxu0 0
    %752 = vmatprep.subr.bf16.mxu0 0
    %753 = vmatpush2.bf16.msra.mxu0 0
    %754 = vmatprep.subr.bf16.mxu0 0
    %755 = vmatpush2.bf16.msra.mxu0 0
    %756 = vmatprep.mubr.bf16.mxu0 0
    %757 = vmatmul.mubr.bf16.gmra.mxu0 %v719
    %v758 = vpop.f32.mrf.mxu0
    %v759 = vadd.f32 0.0, %v758
    %v760 = vpop.f32.mrf.mxu0
    %v761 = vpop.f32.mrf.mxu0
    %v762 = vpop.f32.mrf.mxu0
    %763 = vdwg.mxu0
    %v764 = vld [vmem:[#allocation2 + $0x58] sm:$0xf]
    %v765 = vpack.c.bf16 %v759, %v711
    %v767 = vsel %vm325, %v765, 0
    %v770 = vsel %vm450, %v764, 0
    %772 = vmatprep.subr.bf16.mxu0 0
    %773 = vmatpush1.bf16.msra.mxu0 0
    %774 = vmatprep.subr.bf16.mxu0 0
    %775 = vmatpush1.bf16.msra.mxu0 0
    %776 = vmatprep.subr.bf16.mxu0 0
    %777 = vmatpush1.bf16.msra.mxu0 0
    %778 = vmatprep.subr.bf16.mxu0 0
    %779 = vmatpush1.bf16.msra.mxu0 0
    %780 = vmatprep.subr.bf16.mxu0 0
    %781 = vmatpush1.bf16.msra.mxu0 0
    %782 = vmatprep.subr.bf16.mxu0 0
    %783 = vmatpush1.bf16.msra.mxu0 0
    %784 = vmatprep.subr.bf16.mxu0 0
    %785 = vmatpush1.bf16.msra.mxu0 0
    %786 = vmatprep.subr.bf16.mxu0 0
    %787 = vmatpush1.bf16.msra.mxu0 %v770
    %788 = vmatprep.subr.bf16.mxu0 0
    %789 = vmatpush2.bf16.msra.mxu0 0
    %790 = vmatprep.subr.bf16.mxu0 0
    %791 = vmatpush2.bf16.msra.mxu0 0
    %792 = vmatprep.subr.bf16.mxu0 0
    %793 = vmatpush2.bf16.msra.mxu0 0
    %794 = vmatprep.subr.bf16.mxu0 0
    %795 = vmatpush2.bf16.msra.mxu0 0
    %796 = vmatprep.subr.bf16.mxu0 0
    %797 = vmatpush2.bf16.msra.mxu0 0
    %798 = vmatprep.subr.bf16.mxu0 0
    %799 = vmatpush2.bf16.msra.mxu0 0
    %800 = vmatprep.subr.bf16.mxu0 0
    %801 = vmatpush2.bf16.msra.mxu0 0
    %802 = vmatprep.subr.bf16.mxu0 0
    %803 = vmatpush2.bf16.msra.mxu0 0
    %804 = vmatprep.mubr.bf16.mxu0 0
    %805 = vmatmul.mubr.bf16.gmra.mxu0 %v767
    %v806 = vpop.f32.mrf.mxu0
    %v807 = vadd.f32 0.0, %v806
    %v808 = vpop.f32.mrf.mxu0
    %v809 = vpop.f32.mrf.mxu0
    %v810 = vadd.f32 0.0, %v809
    %v811 = vpop.f32.mrf.mxu0
    %812 = vdwg.mxu0
    %v814 = vsel %vm325, %v543, 0
    %v817 = vsel %vm450, %v542, 0
    %819 = vmatprep.subr.bf16.mxu0 0
    %820 = vmatpush1.bf16.msra.mxu0 0
    %821 = vmatprep.subr.bf16.mxu0 0
    %822 = vmatpush1.bf16.msra.mxu0 0
    %823 = vmatprep.subr.bf16.mxu0 0
    %824 = vmatpush1.bf16.msra.mxu0 0
    %825 = vmatprep.subr.bf16.mxu0 0
    %826 = vmatpush1.bf16.msra.mxu0 0
    %827 = vmatprep.subr.bf16.mxu0 0
    %828 = vmatpush1.bf16.msra.mxu0 0
    %829 = vmatprep.subr.bf16.mxu0 0
    %830 = vmatpush1.bf16.msra.mxu0 0
    %831 = vmatprep.subr.bf16.mxu0 0
    %832 = vmatpush1.bf16.msra.mxu0 0
    %833 = vmatprep.subr.bf16.mxu0 0
    %834 = vmatpush1.bf16.msra.mxu0 %v817
    %835 = vmatprep.subr.bf16.mxu0 0
    %836 = vmatpush2.bf16.msra.mxu0 0
    %837 = vmatprep.subr.bf16.mxu0 0
    %838 = vmatpush2.bf16.msra.mxu0 0
    %839 = vmatprep.subr.bf16.mxu0 0
    %840 = vmatpush2.bf16.msra.mxu0 0
    %841 = vmatprep.subr.bf16.mxu0 0
    %842 = vmatpush2.bf16.msra.mxu0 0
    %843 = vmatprep.subr.bf16.mxu0 0
    %844 = vmatpush2.bf16.msra.mxu0 0
    %845 = vmatprep.subr.bf16.mxu0 0
    %846 = vmatpush2.bf16.msra.mxu0 0
    %847 = vmatprep.subr.bf16.mxu0 0
    %848 = vmatpush2.bf16.msra.mxu0 0
    %849 = vmatprep.subr.bf16.mxu0 0
    %850 = vmatpush2.bf16.msra.mxu0 0
    %851 = vmatprep.mubr.bf16.mxu0 0
    %852 = vmatmul.mubr.bf16.gmra.mxu0 %v814
    %v853 = vpop.f32.mrf.mxu0
    %v854 = vadd.f32 %v807, %v853
    %v855 = vpop.f32.mrf.mxu0
    %v856 = vpop.f32.mrf.mxu0
    %v857 = vadd.f32 %v810, %v856
    %v858 = vpop.f32.mrf.mxu0
    %859 = vdwg.mxu0
    %860 = vrot.lane.b32.xlu0 %v308, 112
    %v861 = vpop.permute.xlu0 %860
    %862 = vrot.lane.b32.xlu0 %v308, 80
    %v863 = vpop.permute.xlu0 %862
    %v865 = vsel %vm325, %v861, 0
    %v868 = vsel %vm325, %v863, 0
    %870 = vmatprep.subr.bf16.mxu0 0
    %871 = vmatpush1.bf16.xpose.msra.mxu0 0
    %872 = vmatprep.subr.bf16.mxu0 0
    %873 = vmatpush1.bf16.xpose.msra.mxu0 0
    %874 = vmatprep.subr.bf16.mxu0 0
    %875 = vmatpush1.bf16.xpose.msra.mxu0 0
    %876 = vmatprep.subr.bf16.mxu0 0
    %877 = vmatpush1.bf16.xpose.msra.mxu0 0
    %878 = vmatprep.subr.bf16.mxu0 0
    %879 = vmatpush1.bf16.xpose.msra.mxu0 0
    %880 = vmatprep.subr.bf16.mxu0 0
    %881 = vmatpush1.bf16.xpose.msra.mxu0 0
    %882 = vmatprep.subr.bf16.mxu0 0
    %883 = vmatpush1.bf16.xpose.msra.mxu0 0
    %884 = vmatprep.subr.bf16.mxu0 0
    %885 = vmatpush1.bf16.xpose.msra.mxu0 %v868
    %886 = vmatprep.subr.bf16.mxu0 0
    %887 = vmatpush2.bf16.xpose.msra.mxu0 0
    %888 = vmatprep.subr.bf16.mxu0 0
    %889 = vmatpush2.bf16.xpose.msra.mxu0 0
    %890 = vmatprep.subr.bf16.mxu0 0
    %891 = vmatpush2.bf16.xpose.msra.mxu0 0
    %892 = vmatprep.subr.bf16.mxu0 0
    %893 = vmatpush2.bf16.xpose.msra.mxu0 0
    %894 = vmatprep.subr.bf16.mxu0 0
    %895 = vmatpush2.bf16.xpose.msra.mxu0 0
    %896 = vmatprep.subr.bf16.mxu0 0
    %897 = vmatpush2.bf16.xpose.msra.mxu0 0
    %898 = vmatprep.subr.bf16.mxu0 0
    %899 = vmatpush2.bf16.xpose.msra.mxu0 0
    %900 = vmatprep.subr.bf16.mxu0 0
    %901 = vmatpush2.bf16.xpose.msra.mxu0 0
    %902 = vmatprep.mubr.bf16.mxu0 0
    %903 = vmatmul.mubr.bf16.gmra.mxu0 %v865
    %v904 = vpop.f32.mrf.mxu0
    %v905 = vadd.f32 %v315, %v904
    %v906 = vpop.f32.mrf.mxu0
    %v907 = vpop.f32.mrf.mxu0
    %v908 = vpop.f32.mrf.mxu0
    %909 = vdwg.mxu0
    %910 = vrot.lane.b32.xlu0 %v309, 112
    %v911 = vpop.permute.xlu0 %910
    %912 = vrot.lane.b32.xlu0 %v309, 80
    %v913 = vpop.permute.xlu0 %912
    %v915 = vsel %vm325, %v911, 0
    %v918 = vsel %vm325, %v913, 0
    %920 = vmatprep.subr.bf16.mxu0 0
    %921 = vmatpush1.bf16.xpose.msra.mxu0 0
    %922 = vmatprep.subr.bf16.mxu0 0
    %923 = vmatpush1.bf16.xpose.msra.mxu0 0
    %924 = vmatprep.subr.bf16.mxu0 0
    %925 = vmatpush1.bf16.xpose.msra.mxu0 0
    %926 = vmatprep.subr.bf16.mxu0 0
    %927 = vmatpush1.bf16.xpose.msra.mxu0 0
    %928 = vmatprep.subr.bf16.mxu0 0
    %929 = vmatpush1.bf16.xpose.msra.mxu0 0
    %930 = vmatprep.subr.bf16.mxu0 0
    %931 = vmatpush1.bf16.xpose.msra.mxu0 0
    %932 = vmatprep.subr.bf16.mxu0 0
    %933 = vmatpush1.bf16.xpose.msra.mxu0 0
    %934 = vmatprep.subr.bf16.mxu0 0
    %935 = vmatpush1.bf16.xpose.msra.mxu0 %v918
    %936 = vmatprep.subr.bf16.mxu0 0
    %937 = vmatpush2.bf16.xpose.msra.mxu0 0
    %938 = vmatprep.subr.bf16.mxu0 0
    %939 = vmatpush2.bf16.xpose.msra.mxu0 0
    %940 = vmatprep.subr.bf16.mxu0 0
    %941 = vmatpush2.bf16.xpose.msra.mxu0 0
    %942 = vmatprep.subr.bf16.mxu0 0
    %943 = vmatpush2.bf16.xpose.msra.mxu0 0
    %944 = vmatprep.subr.bf16.mxu0 0
    %945 = vmatpush2.bf16.xpose.msra.mxu0 0
    %946 = vmatprep.subr.bf16.mxu0 0
    %947 = vmatpush2.bf16.xpose.msra.mxu0 0
    %948 = vmatprep.subr.bf16.mxu0 0
    %949 = vmatpush2.bf16.xpose.msra.mxu0 0
    %950 = vmatprep.subr.bf16.mxu0 0
    %951 = vmatpush2.bf16.xpose.msra.mxu0 0
    %952 = vmatprep.mubr.bf16.mxu0 0
    %953 = vmatmul.mubr.bf16.gmra.mxu0 %v915
    %v954 = vpop.f32.mrf.mxu0
    %v955 = vadd.f32 %v319, %v954
    %v956 = vpop.f32.mrf.mxu0
    %v957 = vpop.f32.mrf.mxu0
    %v958 = vpop.f32.mrf.mxu0
    %959 = vdwg.mxu0
    %v960 = vsel %vm325, %v905, -inf
    %961 = vmax.xlane.f32.xlu0 %v960
    %v962 = vpop.xlane.xlu0 %961
    %v963 = vsel %vm325, %v955, -inf
    %964 = vmax.xlane.f32.xlu0 %v963
    %v965 = vpop.xlane.xlu0 %964
    %v966 = vsub.f32 %v905, %v962
    %v967 = vsub.f32 %v955, %v965
    %v968 = vmul.f32 %v966, 1.442695
    %v969 = vpow.pop %v968
    %v970 = vmul.f32 %v967, 1.442695
    %v971 = vpow.pop %v970
    %v972 = vsel %vm325, %v969, 0.0
    %973 = vadd.xlane.f32.xlu0 %v972
    %v974 = vpop.xlane.xlu0 %973
    %v975 = vsel %vm325, %v971, 0.0
    %976 = vadd.xlane.f32.xlu0 %v975
    %v977 = vpop.xlane.xlu0 %976
    %v978 = vrcp.pop %v974
    %v979 = vrcp.pop %v977
    %v980 = vmul.f32 %v969, %v978
    %v981 = vmul.f32 %v971, %v979
    %v982 = vpack.c.bf16 %v980, %v980
    %v983 = vpack.c.bf16 %v981, %v981
    %984 = vrot.lane.b32.xlu0 %v308, 48
    %v985 = vpop.permute.xlu0 %984
    %v987 = vsel %vm325, %v982, 0
    %v990 = vsel %vm450, %v985, 0
    %992 = vmatprep.subr.bf16.mxu0 0
    %993 = vmatpush1.bf16.msra.mxu0 0
    %994 = vmatprep.subr.bf16.mxu0 0
    %995 = vmatpush1.bf16.msra.mxu0 0
    %996 = vmatprep.subr.bf16.mxu0 0
    %997 = vmatpush1.bf16.msra.mxu0 0
    %998 = vmatprep.subr.bf16.mxu0 0
    %999 = vmatpush1.bf16.msra.mxu0 0
    %1000 = vmatprep.subr.bf16.mxu0 0
    %1001 = vmatpush1.bf16.msra.mxu0 0
    %1002 = vmatprep.subr.bf16.mxu0 0
    %1003 = vmatpush1.bf16.msra.mxu0 0
    %1004 = vmatprep.subr.bf16.mxu0 0
    %1005 = vmatpush1.bf16.msra.mxu0 0
    %1006 = vmatprep.subr.bf16.mxu0 0
    %1007 = vmatpush1.bf16.msra.mxu0 %v990
    %1008 = vmatprep.subr.bf16.mxu0 0
    %1009 = vmatpush2.bf16.msra.mxu0 0
    %1010 = vmatprep.subr.bf16.mxu0 0
    %1011 = vmatpush2.bf16.msra.mxu0 0
    %1012 = vmatprep.subr.bf16.mxu0 0
    %1013 = vmatpush2.bf16.msra.mxu0 0
    %1014 = vmatprep.subr.bf16.mxu0 0
    %1015 = vmatpush2.bf16.msra.mxu0 0
    %1016 = vmatprep.subr.bf16.mxu0 0
    %1017 = vmatpush2.bf16.msra.mxu0 0
    %1018 = vmatprep.subr.bf16.mxu0 0
    %1019 = vmatpush2.bf16.msra.mxu0 0
    %1020 = vmatprep.subr.bf16.mxu0 0
    %1021 = vmatpush2.bf16.msra.mxu0 0
    %1022 = vmatprep.subr.bf16.mxu0 0
    %1023 = vmatpush2.bf16.msra.mxu0 0
    %1024 = vmatprep.mubr.bf16.mxu0 0
    %1025 = vmatmul.mubr.bf16.gmra.mxu0 %v987
    %v1026 = vpop.f32.mrf.mxu0
    %v1027 = vadd.f32 0.0, %v1026
    %v1028 = vpop.f32.mrf.mxu0
    %v1029 = vpop.f32.mrf.mxu0
    %v1030 = vpop.f32.mrf.mxu0
    %1031 = vdwg.mxu0
    %1032 = vrot.lane.b32.xlu0 %v309, 48
    %v1033 = vpop.permute.xlu0 %1032
    %v1035 = vsel %vm325, %v983, 0
    %v1038 = vsel %vm450, %v1033, 0
    %1040 = vmatprep.subr.bf16.mxu0 0
    %1041 = vmatpush1.bf16.msra.mxu0 0
    %1042 = vmatprep.subr.bf16.mxu0 0
    %1043 = vmatpush1.bf16.msra.mxu0 0
    %1044 = vmatprep.subr.bf16.mxu0 0
    %1045 = vmatpush1.bf16.msra.mxu0 0
    %1046 = vmatprep.subr.bf16.mxu0 0
    %1047 = vmatpush1.bf16.msra.mxu0 0
    %1048 = vmatprep.subr.bf16.mxu0 0
    %1049 = vmatpush1.bf16.msra.mxu0 0
    %1050 = vmatprep.subr.bf16.mxu0 0
    %1051 = vmatpush1.bf16.msra.mxu0 0
    %1052 = vmatprep.subr.bf16.mxu0 0
    %1053 = vmatpush1.bf16.msra.mxu0 0
    %1054 = vmatprep.subr.bf16.mxu0 0
    %1055 = vmatpush1.bf16.msra.mxu0 %v1038
    %1056 = vmatprep.subr.bf16.mxu0 0
    %1057 = vmatpush2.bf16.msra.mxu0 0
    %1058 = vmatprep.subr.bf16.mxu0 0
    %1059 = vmatpush2.bf16.msra.mxu0 0
    %1060 = vmatprep.subr.bf16.mxu0 0
    %1061 = vmatpush2.bf16.msra.mxu0 0
    %1062 = vmatprep.subr.bf16.mxu0 0
    %1063 = vmatpush2.bf16.msra.mxu0 0
    %1064 = vmatprep.subr.bf16.mxu0 0
    %1065 = vmatpush2.bf16.msra.mxu0 0
    %1066 = vmatprep.subr.bf16.mxu0 0
    %1067 = vmatpush2.bf16.msra.mxu0 0
    %1068 = vmatprep.subr.bf16.mxu0 0
    %1069 = vmatpush2.bf16.msra.mxu0 0
    %1070 = vmatprep.subr.bf16.mxu0 0
    %1071 = vmatpush2.bf16.msra.mxu0 0
    %1072 = vmatprep.mubr.bf16.mxu0 0
    %1073 = vmatmul.mubr.bf16.gmra.mxu0 %v1035
    %v1074 = vpop.f32.mrf.mxu0
    %v1075 = vadd.f32 0.0, %v1074
    %v1076 = vpop.f32.mrf.mxu0
    %v1077 = vpop.f32.mrf.mxu0
    %v1078 = vpop.f32.mrf.mxu0
    %1079 = vdwg.mxu0
    %v1080 = vld [vmem:[#allocation2 + $0x60] sm:$0xf]
    %v1081 = vpack.c.bf16 %v1075, %v1027
    %v1083 = vsel %vm325, %v1081, 0
    %v1086 = vsel %vm450, %v1080, 0
    %1088 = vmatprep.subr.bf16.mxu0 0
    %1089 = vmatpush1.bf16.msra.mxu0 0
    %1090 = vmatprep.subr.bf16.mxu0 0
    %1091 = vmatpush1.bf16.msra.mxu0 0
    %1092 = vmatprep.subr.bf16.mxu0 0
    %1093 = vmatpush1.bf16.msra.mxu0 0
    %1094 = vmatprep.subr.bf16.mxu0 0
    %1095 = vmatpush1.bf16.msra.mxu0 0
    %1096 = vmatprep.subr.bf16.mxu0 0
    %1097 = vmatpush1.bf16.msra.mxu0 0
    %1098 = vmatprep.subr.bf16.mxu0 0
    %1099 = vmatpush1.bf16.msra.mxu0 0
    %1100 = vmatprep.subr.bf16.mxu0 0
    %1101 = vmatpush1.bf16.msra.mxu0 0
    %1102 = vmatprep.subr.bf16.mxu0 0
    %1103 = vmatpush1.bf16.msra.mxu0 %v1086
    %1104 = vmatprep.subr.bf16.mxu0 0
    %1105 = vmatpush2.bf16.msra.mxu0 0
    %1106 = vmatprep.subr.bf16.mxu0 0
    %1107 = vmatpush2.bf16.msra.mxu0 0
    %1108 = vmatprep.subr.bf16.mxu0 0
    %1109 = vmatpush2.bf16.msra.mxu0 0
    %1110 = vmatprep.subr.bf16.mxu0 0
    %1111 = vmatpush2.bf16.msra.mxu0 0
    %1112 = vmatprep.subr.bf16.mxu0 0
    %1113 = vmatpush2.bf16.msra.mxu0 0
    %1114 = vmatprep.subr.bf16.mxu0 0
    %1115 = vmatpush2.bf16.msra.mxu0 0
    %1116 = vmatprep.subr.bf16.mxu0 0
    %1117 = vmatpush2.bf16.msra.mxu0 0
    %1118 = vmatprep.subr.bf16.mxu0 0
    %1119 = vmatpush2.bf16.msra.mxu0 0
    %1120 = vmatprep.mubr.bf16.mxu0 0
    %1121 = vmatmul.mubr.bf16.gmra.mxu0 %v1083
    %v1122 = vpop.f32.mrf.mxu0
    %v1123 = vadd.f32 0.0, %v1122
    %v1124 = vpop.f32.mrf.mxu0
    %v1125 = vpop.f32.mrf.mxu0
    %v1126 = vadd.f32 0.0, %v1125
    %v1127 = vpop.f32.mrf.mxu0
    %1128 = vdwg.mxu0
    %v1129 = vadd.f32 %v854, %v1123
    %v1130 = vadd.f32 %v857, %v1126
    %1131 = vrot.lane.b32.xlu0 %v308, 104
    %v1132 = vpop.permute.xlu0 %1131
    %1133 = vrot.lane.b32.xlu0 %v308, 72
    %v1134 = vpop.permute.xlu0 %1133
    %v1136 = vsel %vm325, %v1132, 0
    %v1139 = vsel %vm325, %v1134, 0
    %1141 = vmatprep.subr.bf16.mxu0 0
    %1142 = vmatpush1.bf16.xpose.msra.mxu0 0
    %1143 = vmatprep.subr.bf16.mxu0 0
    %1144 = vmatpush1.bf16.xpose.msra.mxu0 0
    %1145 = vmatprep.subr.bf16.mxu0 0
    %1146 = vmatpush1.bf16.xpose.msra.mxu0 0
    %1147 = vmatprep.subr.bf16.mxu0 0
    %1148 = vmatpush1.bf16.xpose.msra.mxu0 0
    %1149 = vmatprep.subr.bf16.mxu0 0
    %1150 = vmatpush1.bf16.xpose.msra.mxu0 0
    %1151 = vmatprep.subr.bf16.mxu0 0
    %1152 = vmatpush1.bf16.xpose.msra.mxu0 0
    %1153 = vmatprep.subr.bf16.mxu0 0
    %1154 = vmatpush1.bf16.xpose.msra.mxu0 0
    %1155 = vmatprep.subr.bf16.mxu0 0
    %1156 = vmatpush1.bf16.xpose.msra.mxu0 %v1139
    %1157 = vmatprep.subr.bf16.mxu0 0
    %1158 = vmatpush2.bf16.xpose.msra.mxu0 0
    %1159 = vmatprep.subr.bf16.mxu0 0
    %1160 = vmatpush2.bf16.xpose.msra.mxu0 0
    %1161 = vmatprep.subr.bf16.mxu0 0
    %1162 = vmatpush2.bf16.xpose.msra.mxu0 0
    %1163 = vmatprep.subr.bf16.mxu0 0
    %1164 = vmatpush2.bf16.xpose.msra.mxu0 0
    %1165 = vmatprep.subr.bf16.mxu0 0
    %1166 = vmatpush2.bf16.xpose.msra.mxu0 0
    %1167 = vmatprep.subr.bf16.mxu0 0
    %1168 = vmatpush2.bf16.xpose.msra.mxu0 0
    %1169 = vmatprep.subr.bf16.mxu0 0
    %1170 = vmatpush2.bf16.xpose.msra.mxu0 0
    %1171 = vmatprep.subr.bf16.mxu0 0
    %1172 = vmatpush2.bf16.xpose.msra.mxu0 0
    %1173 = vmatprep.mubr.bf16.mxu0 0
    %1174 = vmatmul.mubr.bf16.gmra.mxu0 %v1136
    %v1175 = vpop.f32.mrf.mxu0
    %v1176 = vadd.f32 %v315, %v1175
    %v1177 = vpop.f32.mrf.mxu0
    %v1178 = vpop.f32.mrf.mxu0
    %v1179 = vpop.f32.mrf.mxu0
    %1180 = vdwg.mxu0
    %1181 = vrot.lane.b32.xlu0 %v309, 104
    %v1182 = vpop.permute.xlu0 %1181
    %1183 = vrot.lane.b32.xlu0 %v309, 72
    %v1184 = vpop.permute.xlu0 %1183
    %v1186 = vsel %vm325, %v1182, 0
    %v1189 = vsel %vm325, %v1184, 0
    %1191 = vmatprep.subr.bf16.mxu0 0
    %1192 = vmatpush1.bf16.xpose.msra.mxu0 0
    %1193 = vmatprep.subr.bf16.mxu0 0
    %1194 = vmatpush1.bf16.xpose.msra.mxu0 0
    %1195 = vmatprep.subr.bf16.mxu0 0
    %1196 = vmatpush1.bf16.xpose.msra.mxu0 0
    %1197 = vmatprep.subr.bf16.mxu0 0
    %1198 = vmatpush1.bf16.xpose.msra.mxu0 0
    %1199 = vmatprep.subr.bf16.mxu0 0
    %1200 = vmatpush1.bf16.xpose.msra.mxu0 0
    %1201 = vmatprep.subr.bf16.mxu0 0
    %1202 = vmatpush1.bf16.xpose.msra.mxu0 0
    %1203 = vmatprep.subr.bf16.mxu0 0
    %1204 = vmatpush1.bf16.xpose.msra.mxu0 0
    %1205 = vmatprep.subr.bf16.mxu0 0
    %1206 = vmatpush1.bf16.xpose.msra.mxu0 %v1189
    %1207 = vmatprep.subr.bf16.mxu0 0
    %1208 = vmatpush2.bf16.xpose.msra.mxu0 0
    %1209 = vmatprep.subr.bf16.mxu0 0
    %1210 = vmatpush2.bf16.xpose.msra.mxu0 0
    %1211 = vmatprep.subr.bf16.mxu0 0
    %1212 = vmatpush2.bf16.xpose.msra.mxu0 0
    %1213 = vmatprep.subr.bf16.mxu0 0
    %1214 = vmatpush2.bf16.xpose.msra.mxu0 0
    %1215 = vmatprep.subr.bf16.mxu0 0
    %1216 = vmatpush2.bf16.xpose.msra.mxu0 0
    %1217 = vmatprep.subr.bf16.mxu0 0
    %1218 = vmatpush2.bf16.xpose.msra.mxu0 0
    %1219 = vmatprep.subr.bf16.mxu0 0
    %1220 = vmatpush2.bf16.xpose.msra.mxu0 0
    %1221 = vmatprep.subr.bf16.mxu0 0
    %1222 = vmatpush2.bf16.xpose.msra.mxu0 0
    %1223 = vmatprep.mubr.bf16.mxu0 0
    %1224 = vmatmul.mubr.bf16.gmra.mxu0 %v1186
    %v1225 = vpop.f32.mrf.mxu0
    %v1226 = vadd.f32 %v319, %v1225
    %v1227 = vpop.f32.mrf.mxu0
    %v1228 = vpop.f32.mrf.mxu0
    %v1229 = vpop.f32.mrf.mxu0
    %1230 = vdwg.mxu0
    %v1231 = vsel %vm325, %v1176, -inf
    %1232 = vmax.xlane.f32.xlu0 %v1231
    %v1233 = vpop.xlane.xlu0 %1232
    %v1234 = vsel %vm325, %v1226, -inf
    %1235 = vmax.xlane.f32.xlu0 %v1234
    %v1236 = vpop.xlane.xlu0 %1235
    %v1237 = vsub.f32 %v1176, %v1233
    %v1238 = vsub.f32 %v1226, %v1236
    %v1239 = vmul.f32 %v1237, 1.442695
    %v1240 = vpow.pop %v1239
    %v1241 = vmul.f32 %v1238, 1.442695
    %v1242 = vpow.pop %v1241
    %v1243 = vsel %vm325, %v1240, 0.0
    %1244 = vadd.xlane.f32.xlu0 %v1243
    %v1245 = vpop.xlane.xlu0 %1244
    %v1246 = vsel %vm325, %v1242, 0.0
    %1247 = vadd.xlane.f32.xlu0 %v1246
    %v1248 = vpop.xlane.xlu0 %1247
    %v1249 = vrcp.pop %v1245
    %v1250 = vrcp.pop %v1248
    %v1251 = vmul.f32 %v1240, %v1249
    %v1252 = vmul.f32 %v1242, %v1250
    %v1253 = vpack.c.bf16 %v1251, %v1251
    %v1254 = vpack.c.bf16 %v1252, %v1252
    %1255 = vrot.lane.b32.xlu0 %v308, 40
    %v1256 = vpop.permute.xlu0 %1255
    %v1258 = vsel %vm325, %v1253, 0
    %v1261 = vsel %vm450, %v1256, 0
    %1263 = vmatprep.subr.bf16.mxu0 0
    %1264 = vmatpush1.bf16.msra.mxu0 0
    %1265 = vmatprep.subr.bf16.mxu0 0
    %1266 = vmatpush1.bf16.msra.mxu0 0
    %1267 = vmatprep.subr.bf16.mxu0 0
    %1268 = vmatpush1.bf16.msra.mxu0 0
    %1269 = vmatprep.subr.bf16.mxu0 0
    %1270 = vmatpush1.bf16.msra.mxu0 0
    %1271 = vmatprep.subr.bf16.mxu0 0
    %1272 = vmatpush1.bf16.msra.mxu0 0
    %1273 = vmatprep.subr.bf16.mxu0 0
    %1274 = vmatpush1.bf16.msra.mxu0 0
    %1275 = vmatprep.subr.bf16.mxu0 0
    %1276 = vmatpush1.bf16.msra.mxu0 0
    %1277 = vmatprep.subr.bf16.mxu0 0
    %1278 = vmatpush1.bf16.msra.mxu0 %v1261
    %1279 = vmatprep.subr.bf16.mxu0 0
    %1280 = vmatpush2.bf16.msra.mxu0 0
    %1281 = vmatprep.subr.bf16.mxu0 0
    %1282 = vmatpush2.bf16.msra.mxu0 0
    %1283 = vmatprep.subr.bf16.mxu0 0
    %1284 = vmatpush2.bf16.msra.mxu0 0
    %1285 = vmatprep.subr.bf16.mxu0 0
    %1286 = vmatpush2.bf16.msra.mxu0 0
    %1287 = vmatprep.subr.bf16.mxu0 0
    %1288 = vmatpush2.bf16.msra.mxu0 0
    %1289 = vmatprep.subr.bf16.mxu0 0
    %1290 = vmatpush2.bf16.msra.mxu0 0
    %1291 = vmatprep.subr.bf16.mxu0 0
    %1292 = vmatpush2.bf16.msra.mxu0 0
    %1293 = vmatprep.subr.bf16.mxu0 0
    %1294 = vmatpush2.bf16.msra.mxu0 0
    %1295 = vmatprep.mubr.bf16.mxu0 0
    %1296 = vmatmul.mubr.bf16.gmra.mxu0 %v1258
    %v1297 = vpop.f32.mrf.mxu0
    %v1298 = vadd.f32 0.0, %v1297
    %v1299 = vpop.f32.mrf.mxu0
    %v1300 = vpop.f32.mrf.mxu0
    %v1301 = vpop.f32.mrf.mxu0
    %1302 = vdwg.mxu0
    %1303 = vrot.lane.b32.xlu0 %v309, 40
    %v1304 = vpop.permute.xlu0 %1303
    %v1306 = vsel %vm325, %v1254, 0
    %v1309 = vsel %vm450, %v1304, 0
    %1311 = vmatprep.subr.bf16.mxu0 0
    %1312 = vmatpush1.bf16.msra.mxu0 0
    %1313 = vmatprep.subr.bf16.mxu0 0
    %1314 = vmatpush1.bf16.msra.mxu0 0
    %1315 = vmatprep.subr.bf16.mxu0 0
    %1316 = vmatpush1.bf16.msra.mxu0 0
    %1317 = vmatprep.subr.bf16.mxu0 0
    %1318 = vmatpush1.bf16.msra.mxu0 0
    %1319 = vmatprep.subr.bf16.mxu0 0
    %1320 = vmatpush1.bf16.msra.mxu0 0
    %1321 = vmatprep.subr.bf16.mxu0 0
    %1322 = vmatpush1.bf16.msra.mxu0 0
    %1323 = vmatprep.subr.bf16.mxu0 0
    %1324 = vmatpush1.bf16.msra.mxu0 0
    %1325 = vmatprep.subr.bf16.mxu0 0
    %1326 = vmatpush1.bf16.msra.mxu0 %v1309
    %1327 = vmatprep.subr.bf16.mxu0 0
    %1328 = vmatpush2.bf16.msra.mxu0 0
    %1329 = vmatprep.subr.bf16.mxu0 0
    %1330 = vmatpush2.bf16.msra.mxu0 0
    %1331 = vmatprep.subr.bf16.mxu0 0
    %1332 = vmatpush2.bf16.msra.mxu0 0
    %1333 = vmatprep.subr.bf16.mxu0 0
    %1334 = vmatpush2.bf16.msra.mxu0 0
    %1335 = vmatprep.subr.bf16.mxu0 0
    %1336 = vmatpush2.bf16.msra.mxu0 0
    %1337 = vmatprep.subr.bf16.mxu0 0
    %1338 = vmatpush2.bf16.msra.mxu0 0
    %1339 = vmatprep.subr.bf16.mxu0 0
    %1340 = vmatpush2.bf16.msra.mxu0 0
    %1341 = vmatprep.subr.bf16.mxu0 0
    %1342 = vmatpush2.bf16.msra.mxu0 0
    %1343 = vmatprep.mubr.bf16.mxu0 0
    %1344 = vmatmul.mubr.bf16.gmra.mxu0 %v1306
    %v1345 = vpop.f32.mrf.mxu0
    %v1346 = vadd.f32 0.0, %v1345
    %v1347 = vpop.f32.mrf.mxu0
    %v1348 = vpop.f32.mrf.mxu0
    %v1349 = vpop.f32.mrf.mxu0
    %1350 = vdwg.mxu0
    %v1351 = vld [vmem:[#allocation2 + $0x68] sm:$0xf]
    %v1352 = vpack.c.bf16 %v1346, %v1298
    %v1354 = vsel %vm325, %v1352, 0
    %v1357 = vsel %vm450, %v1351, 0
    %1359 = vmatprep.subr.bf16.mxu0 0
    %1360 = vmatpush1.bf16.msra.mxu0 0
    %1361 = vmatprep.subr.bf16.mxu0 0
    %1362 = vmatpush1.bf16.msra.mxu0 0
    %1363 = vmatprep.subr.bf16.mxu0 0
    %1364 = vmatpush1.bf16.msra.mxu0 0
    %1365 = vmatprep.subr.bf16.mxu0 0
    %1366 = vmatpush1.bf16.msra.mxu0 0
    %1367 = vmatprep.subr.bf16.mxu0 0
    %1368 = vmatpush1.bf16.msra.mxu0 0
    %1369 = vmatprep.subr.bf16.mxu0 0
    %1370 = vmatpush1.bf16.msra.mxu0 0
    %1371 = vmatprep.subr.bf16.mxu0 0
    %1372 = vmatpush1.bf16.msra.mxu0 0
    %1373 = vmatprep.subr.bf16.mxu0 0
    %1374 = vmatpush1.bf16.msra.mxu0 %v1357
    %1375 = vmatprep.subr.bf16.mxu0 0
    %1376 = vmatpush2.bf16.msra.mxu0 0
    %1377 = vmatprep.subr.bf16.mxu0 0
    %1378 = vmatpush2.bf16.msra.mxu0 0
    %1379 = vmatprep.subr.bf16.mxu0 0
    %1380 = vmatpush2.bf16.msra.mxu0 0
    %1381 = vmatprep.subr.bf16.mxu0 0
    %1382 = vmatpush2.bf16.msra.mxu0 0
    %1383 = vmatprep.subr.bf16.mxu0 0
    %1384 = vmatpush2.bf16.msra.mxu0 0
    %1385 = vmatprep.subr.bf16.mxu0 0
    %1386 = vmatpush2.bf16.msra.mxu0 0
    %1387 = vmatprep.subr.bf16.mxu0 0
    %1388 = vmatpush2.bf16.msra.mxu0 0
    %1389 = vmatprep.subr.bf16.mxu0 0
    %1390 = vmatpush2.bf16.msra.mxu0 0
    %1391 = vmatprep.mubr.bf16.mxu0 0
    %1392 = vmatmul.mubr.bf16.gmra.mxu0 %v1354
    %v1393 = vpop.f32.mrf.mxu0
    %v1394 = vadd.f32 0.0, %v1393
    %v1395 = vpop.f32.mrf.mxu0
    %v1396 = vpop.f32.mrf.mxu0
    %v1397 = vadd.f32 0.0, %v1396
    %v1398 = vpop.f32.mrf.mxu0
    %1399 = vdwg.mxu0
    %v1400 = vadd.f32 %v1129, %v1394
    %v1401 = vadd.f32 %v1130, %v1397
    %v1402 = vld [vmem:[#allocation5 + $0x13] sm:$0x1]
    %v1403 = vlaneseq
    %v1404 = vshrl.u32 %v1403, 7
    %v1405 = vsub.s32 0, %v1404
    %v1406 = vrot.slane %v1402, %v1405
    %v1407 = vadd.f32 %v1400, %v1406
    %v1408 = vadd.f32 %v1401, %v1406
    %v1409 = vadd.f32 %v211, %v1407
    %v1410 = vadd.f32 %v212, %v1408
    %v1411 = vld [vmem:[#allocation5 + $0x14] sm:$0x1]
    %v1412 = vld [vmem:[#allocation5 + $0x15] sm:$0x1]
    %v1413 = vsel %vm173, %v1409, 0.0
    %1414 = vadd.xlane.f32.xlu0 %v1413
    %v1415 = vpop.xlane.xlu0 %1414
    %v1416 = vsel %vm173, %v1410, 0.0
    %1417 = vadd.xlane.f32.xlu0 %v1416
    %v1418 = vpop.xlane.xlu0 %1417
    %v1419 = vmul.f32 %v1415, %v180
    %v1420 = vmul.f32 %v1418, %v180
    %v1421 = vsub.f32 %v1409, %v1419
    %v1422 = vsub.f32 %v1410, %v1420
    %v1423 = vmul.f32 %v1421, %v1421
    %v1424 = vmul.f32 %v1422, %v1422
    %v1425 = vsel %vm173, %v1423, 0.0
    %1426 = vadd.xlane.f32.xlu0 %v1425
    %v1427 = vpop.xlane.xlu0 %1426
    %v1428 = vsel %vm173, %v1424, 0.0
    %1429 = vadd.xlane.f32.xlu0 %v1428
    %v1430 = vpop.xlane.xlu0 %1429
    %v1431 = vmul.f32 %v1427, %v180
    %v1432 = vmul.f32 %v1430, %v180
    %v1433 = vadd.f32 %v1431, 1e-12
    %v1434 = vadd.f32 %v1432, 1e-12
    %v1435 = vrsqrt.pop %v1433
    %v1436 = vrsqrt.pop %v1434
    %v1437 = vmul.f32 %v1421, %v1435
    %v1438 = vmul.f32 %v1422, %v1436
    %v1439 = vlaneseq
    %v1440 = vshrl.u32 %v1439, 7
    %v1441 = vsub.s32 0, %v1440
    %v1442 = vrot.slane %v1411, %v1441
    %v1443 = vmul.f32 %v1437, %v1442
    %v1444 = vmul.f32 %v1438, %v1442
    %v1445 = vlaneseq
    %v1446 = vshrl.u32 %v1445, 7
    %v1447 = vsub.s32 0, %v1446
    %v1448 = vrot.slane %v1412, %v1447
    %v1449 = vadd.f32 %v1443, %v1448
    %v1450 = vadd.f32 %v1444, %v1448
    %v1451 = vld [vmem:[#allocation2 + $0x70] sm:$0xf]
    %v1452 = vld [vmem:[#allocation2 + $0x74] sm:$0xf]
    %v1453 = vld [vmem:[#allocation2 + $0x78] sm:$0xf]
    %v1454 = vld [vmem:[#allocation2 + $0x7c] sm:$0xf]
    %v1455 = vld [vmem:[#allocation5 + $0x16] sm:$0x1]
    %v1456 = vpack.c.bf16 %v1450, %v1449
    %v1457 = vlaneseq
    %v1458 = vshrl.u32 %v1457, 7
    %v1459 = vsub.s32 0, %v1458
    %v1460 = vrot.slane %v1455, %v1459
    %v1465 = vunpack.c.l.b16 %v1451
    %v1466 = vunpack.c.l.b16 %v1452
    %v1467 = vunpack.c.l.b16 %v1453
    %v1468 = vunpack.c.l.b16 %v1454
    %v1469 = vpack.c.b16 %v1466, %v1465
    %v1470 = vpack.c.b16 %v1468, %v1467
    %v1474 = vsel %vm173, %v1456, 0
    %1476 = vmatprep.subr.bf16.mxu0 0
    %1477 = vmatpush1.bf16.msra.mxu0 0
    %1478 = vmatprep.subr.bf16.mxu0 0
    %1479 = vmatpush1.bf16.msra.mxu0 0
    %1480 = vmatprep.subr.bf16.mxu0 0
    %1481 = vmatpush1.bf16.msra.mxu0 0
    %1482 = vmatprep.subr.bf16.mxu0 0
    %1483 = vmatpush1.bf16.msra.mxu0 0
    %1484 = vmatprep.subr.bf16.mxu0 0
    %1485 = vmatpush1.bf16.msra.mxu0 0
    %1486 = vmatprep.subr.bf16.mxu0 0
    %1487 = vmatpush1.bf16.msra.mxu0 0
    %1488 = vmatprep.subr.bf16.mxu0 0
    %1489 = vmatpush1.bf16.msra.mxu0 %v1470
    %1490 = vmatprep.subr.bf16.mxu0 0
    %1491 = vmatpush1.bf16.msra.mxu0 %v1469
    %1492 = vmatprep.subr.bf16.mxu0 0
    %1493 = vmatpush2.bf16.msra.mxu0 0
    %1494 = vmatprep.subr.bf16.mxu0 0
    %1495 = vmatpush2.bf16.msra.mxu0 0
    %1496 = vmatprep.subr.bf16.mxu0 0
    %1497 = vmatpush2.bf16.msra.mxu0 0
    %1498 = vmatprep.subr.bf16.mxu0 0
    %1499 = vmatpush2.bf16.msra.mxu0 0
    %1500 = vmatprep.subr.bf16.mxu0 0
    %1501 = vmatpush2.bf16.msra.mxu0 0
    %1502 = vmatprep.subr.bf16.mxu0 0
    %1503 = vmatpush2.bf16.msra.mxu0 0
    %1504 = vmatprep.subr.bf16.mxu0 0
    %1505 = vmatpush2.bf16.msra.mxu0 0
    %1506 = vmatprep.subr.bf16.mxu0 0
    %1507 = vmatpush2.bf16.msra.mxu0 0
    %1508 = vmatprep.mubr.bf16.mxu0 0
    %1509 = vmatmul.mubr.bf16.gmra.mxu0 %v1474
    %v1510 = vpop.f32.mrf.mxu0
    %v1511 = vadd.f32 %v1460, %v1510
    %v1512 = vpop.f32.mrf.mxu0
    %v1513 = vpop.f32.mrf.mxu0
    %v1514 = vadd.f32 %v1460, %v1513
    %v1515 = vpop.f32.mrf.mxu0
    %1516 = vdwg.mxu0
    %v1517 = vmul.f32 %v1511, %v1511
    %v1518 = vmul.f32 %v1514, %v1514
    %v1519 = vmul.f32 %v1511, %v1517
    %v1520 = vmul.f32 %v1514, %v1518
    %v1521 = vmul.f32 %v1519, 0.044715
    %v1522 = vmul.f32 %v1520, 0.044715
    %v1523 = vadd.f32 %v1511, %v1521
    %v1524 = vadd.f32 %v1514, %v1522
    %v1525 = vmul.f32 %v1523, 0.7978846
    %v1526 = vmul.f32 %v1524, 0.7978846
    %v1527 = vtanh.pop %v1525
    %v1528 = vtanh.pop %v1526
    %v1529 = vadd.f32 %v1527, 1.0
    %v1530 = vadd.f32 %v1528, 1.0
    %v1531 = vmul.f32 %v1529, 0.5
    %v1532 = vmul.f32 %v1530, 0.5
    %v1533 = vmul.f32 %v1511, %v1531
    %v1534 = vmul.f32 %v1514, %v1532
    %v1535 = vld [vmem:[#allocation2 + $0x80] sm:$0xf]
    %v1536 = vld [vmem:[#allocation2 + $0x84] sm:$0xf]
    %v1537 = vld [vmem:[#allocation2 + $0x88] sm:$0xf]
    %v1538 = vld [vmem:[#allocation2 + $0x8c] sm:$0xf]
    %v1539 = vld [vmem:[#allocation2 + $0x90] sm:$0xf]
    %v1540 = vld [vmem:[#allocation2 + $0x94] sm:$0xf]
    %v1541 = vld [vmem:[#allocation2 + $0x98] sm:$0xf]
    %v1542 = vld [vmem:[#allocation2 + $0x9c] sm:$0xf]
    %v1543 = vld [vmem:[#allocation5 + $0x17] sm:$0x1]
    %v1544 = vpack.c.bf16 %v1534, %v1533
    %v1545 = vlaneseq
    %v1546 = vshrl.u32 %v1545, 7
    %v1547 = vsub.s32 0, %v1546
    %v1548 = vrot.slane %v1543, %v1547
    %v1557 = vunpack.c.l.b16 %v1535
    %v1558 = vunpack.c.l.b16 %v1536
    %v1559 = vunpack.c.l.b16 %v1537
    %v1560 = vunpack.c.l.b16 %v1538
    %v1561 = vunpack.c.l.b16 %v1539
    %v1562 = vunpack.c.l.b16 %v1540
    %v1563 = vunpack.c.l.b16 %v1541
    %v1564 = vunpack.c.l.b16 %v1542
    %v1565 = vpack.c.b16 %v1558, %v1557
    %v1566 = vpack.c.b16 %v1560, %v1559
    %v1567 = vpack.c.b16 %v1562, %v1561
    %v1568 = vpack.c.b16 %v1564, %v1563
    %vm1573 = vcmask 523264
    %v1575 = vsel %vm1573, %v1544, 0
    %1577 = vmatprep.subr.bf16.mxu0 0
    %1578 = vmatpush1.bf16.msra.mxu0 0
    %1579 = vmatprep.subr.bf16.mxu0 0
    %1580 = vmatpush1.bf16.msra.mxu0 0
    %1581 = vmatprep.subr.bf16.mxu0 0
    %1582 = vmatpush1.bf16.msra.mxu0 0
    %1583 = vmatprep.subr.bf16.mxu0 0
    %1584 = vmatpush1.bf16.msra.mxu0 0
    %1585 = vmatprep.subr.bf16.mxu0 0
    %1586 = vmatpush1.bf16.msra.mxu0 %v1568
    %1587 = vmatprep.subr.bf16.mxu0 0
    %1588 = vmatpush1.bf16.msra.mxu0 %v1567
    %1589 = vmatprep.subr.bf16.mxu0 0
    %1590 = vmatpush1.bf16.msra.mxu0 %v1566
    %1591 = vmatprep.subr.bf16.mxu0 0
    %1592 = vmatpush1.bf16.msra.mxu0 %v1565
    %1593 = vmatprep.subr.bf16.mxu0 0
    %1594 = vmatpush2.bf16.msra.mxu0 0
    %1595 = vmatprep.subr.bf16.mxu0 0
    %1596 = vmatpush2.bf16.msra.mxu0 0
    %1597 = vmatprep.subr.bf16.mxu0 0
    %1598 = vmatpush2.bf16.msra.mxu0 0
    %1599 = vmatprep.subr.bf16.mxu0 0
    %1600 = vmatpush2.bf16.msra.mxu0 0
    %1601 = vmatprep.subr.bf16.mxu0 0
    %1602 = vmatpush2.bf16.msra.mxu0 0
    %1603 = vmatprep.subr.bf16.mxu0 0
    %1604 = vmatpush2.bf16.msra.mxu0 0
    %1605 = vmatprep.subr.bf16.mxu0 0
    %1606 = vmatpush2.bf16.msra.mxu0 0
    %1607 = vmatprep.subr.bf16.mxu0 0
    %1608 = vmatpush2.bf16.msra.mxu0 0
    %1609 = vmatprep.mubr.bf16.mxu0 0
    %1610 = vmatmul.mubr.bf16.gmra.mxu0 %v1575
    %v1611 = vpop.f32.mrf.mxu0
    %v1612 = vadd.f32 %v1548, %v1611
    %v1613 = vpop.f32.mrf.mxu0
    %v1614 = vpop.f32.mrf.mxu0
    %v1615 = vadd.f32 %v1548, %v1614
    %v1616 = vpop.f32.mrf.mxu0
    %1617 = vdwg.mxu0
    %v1618 = vadd.f32 %v1449, %v1612
    %v1619 = vadd.f32 %v1450, %v1615
    %v1620 = vld [vmem:[#allocation5 + $0x18] sm:$0x1]
    %v1621 = vld [vmem:[#allocation5 + $0x19] sm:$0x1]
    %v1622 = vsel %vm173, %v1618, 0.0
    %1623 = vadd.xlane.f32.xlu0 %v1622
    %v1624 = vpop.xlane.xlu0 %1623
    %v1625 = vsel %vm173, %v1619, 0.0
    %1626 = vadd.xlane.f32.xlu0 %v1625
    %v1627 = vpop.xlane.xlu0 %1626
    %v1628 = vmul.f32 %v1624, %v180
    %v1629 = vmul.f32 %v1627, %v180
    %v1630 = vsub.f32 %v1618, %v1628
    %v1631 = vsub.f32 %v1619, %v1629
    %v1632 = vmul.f32 %v1630, %v1630
    %v1633 = vmul.f32 %v1631, %v1631
    %v1634 = vsel %vm173, %v1632, 0.0
    %1635 = vadd.xlane.f32.xlu0 %v1634
    %v1636 = vpop.xlane.xlu0 %1635
    %v1637 = vsel %vm173, %v1633, 0.0
    %1638 = vadd.xlane.f32.xlu0 %v1637
    %v1639 = vpop.xlane.xlu0 %1638
    %v1640 = vmul.f32 %v1636, %v180
    %v1641 = vmul.f32 %v1639, %v180
    %v1642 = vadd.f32 %v1640, 1e-12
    %v1643 = vadd.f32 %v1641, 1e-12
    %v1644 = vrsqrt.pop %v1642
    %v1645 = vrsqrt.pop %v1643
    %v1646 = vmul.f32 %v1630, %v1644
    %v1647 = vmul.f32 %v1631, %v1645
    %v1648 = vlaneseq
    %v1649 = vshrl.u32 %v1648, 7
    %v1650 = vsub.s32 0, %v1649
    %v1651 = vrot.slane %v1620, %v1650
    %v1652 = vmul.f32 %v1646, %v1651
    %v1653 = vmul.f32 %v1647, %v1651
    %v1654 = vlaneseq
    %v1655 = vshrl.u32 %v1654, 7
    %v1656 = vsub.s32 0, %v1655
    %v1657 = vrot.slane %v1621, %v1656
    %v1658 = vadd.f32 %v1652, %v1657
    %v1659 = vadd.f32 %v1653, %v1657
    %v1660 = vld [vmem:[#allocation2 + $0xa0] sm:$0xf]
    %v1661 = vld [vmem:[#allocation2 + $0xa4] sm:$0xf]
    %v1662 = vld [vmem:[#allocation2 + $0xa8] sm:$0xf]
    %v1663 = vld [vmem:[#allocation2 + $0xac] sm:$0xf]
    %v1664 = vld [vmem:[#allocation5 + $0x1a] sm:$0x1]
    %v1665 = vpack.c.bf16 %v1658, %v1658
    %v1666 = vpack.c.bf16 %v1659, %v1659
    %v1667 = vlaneseq
    %v1668 = vshrl.u32 %v1667, 7
    %v1669 = vsub.s32 0, %v1668
    %v1670 = vrot.slane %v1664, %v1669
    %v1673 = vunpack.c.l.b16 %v1665
    %v1674 = vunpack.c.l.b16 %v1666
    %v1675 = vrot.slane %v1674, 7
    %vm1676 = vcmask 1041409
    %v1677 = vsel %vm1676, %v1675, %v1673
    %v1678 = vpack.c.b16 %v1677, %v1677
    %v1683 = vunpack.c.l.b16 %v1660
    %v1684 = vunpack.c.l.b16 %v1661
    %v1685 = vunpack.c.l.b16 %v1662
    %v1686 = vunpack.c.l.b16 %v1663
    %v1687 = vpack.c.b16 %v1684, %v1683
    %v1688 = vpack.c.b16 %v1686, %v1685
    %v1692 = vsel %vm173, %v1678, 0
    %1694 = vmatprep.subr.bf16.mxu0 0
    %1695 = vmatpush1.bf16.msra.mxu0 0
    %1696 = vmatprep.subr.bf16.mxu0 0
    %1697 = vmatpush1.bf16.msra.mxu0 0
    %1698 = vmatprep.subr.bf16.mxu0 0
    %1699 = vmatpush1.bf16.msra.mxu0 0
    %1700 = vmatprep.subr.bf16.mxu0 0
    %1701 = vmatpush1.bf16.msra.mxu0 0
    %1702 = vmatprep.subr.bf16.mxu0 0
    %1703 = vmatpush1.bf16.msra.mxu0 0
    %1704 = vmatprep.subr.bf16.mxu0 0
    %1705 = vmatpush1.bf16.msra.mxu0 0
    %1706 = vmatprep.subr.bf16.mxu0 0
    %1707 = vmatpush1.bf16.msra.mxu0 %v1688
    %1708 = vmatprep.subr.bf16.mxu0 0
    %1709 = vmatpush1.bf16.msra.mxu0 %v1687
    %1710 = vmatprep.subr.bf16.mxu0 0
    %1711 = vmatpush2.bf16.msra.mxu0 0
    %1712 = vmatprep.subr.bf16.mxu0 0
    %1713 = vmatpush2.bf16.msra.mxu0 0
    %1714 = vmatprep.subr.bf16.mxu0 0
    %1715 = vmatpush2.bf16.msra.mxu0 0
    %1716 = vmatprep.subr.bf16.mxu0 0
    %1717 = vmatpush2.bf16.msra.mxu0 0
    %1718 = vmatprep.subr.bf16.mxu0 0
    %1719 = vmatpush2.bf16.msra.mxu0 0
    %1720 = vmatprep.subr.bf16.mxu0 0
    %1721 = vmatpush2.bf16.msra.mxu0 0
    %1722 = vmatprep.subr.bf16.mxu0 0
    %1723 = vmatpush2.bf16.msra.mxu0 0
    %1724 = vmatprep.subr.bf16.mxu0 0
    %1725 = vmatpush2.bf16.msra.mxu0 0
    %1726 = vmatprep.mubr.bf16.mxu0 0
    %1727 = vmatmul.mubr.bf16.gmra.mxu0 %v1692
    %v1728 = vpop.f32.mrf.mxu0
    %v1729 = vadd.f32 %v1670, %v1728
    %v1730 = vpop.f32.mrf.mxu0
    %v1731 = vpop.f32.mrf.mxu0
    %v1732 = vpop.f32.mrf.mxu0
    %1733 = vdwg.mxu0
    %v1734 = vtanh.pop %v1729
    %v1735 = vld [vmem:[#allocation2 + $0xb0] sm:$0xf]
    %v1736 = vld [vmem:[#allocation2 + $0xb4] sm:$0xf]
    %v1737 = vld [vmem:[#allocation2 + $0xb8] sm:$0xf]
    %v1738 = vld [vmem:[#allocation2 + $0xbc] sm:$0xf]
    %v1739 = vld [vmem:[#allocation5 + $0x1b] sm:$0x1]
    %v1740 = vpack.c.bf16 %v1734, %v1734
    %v1741 = vlaneseq
    %v1742 = vshrl.u32 %v1741, 7
    %v1743 = vsub.s32 0, %v1742
    %v1744 = vrot.slane %v1739, %v1743
    %v1749 = vunpack.c.l.b16 %v1735
    %v1750 = vunpack.c.l.b16 %v1736
    %v1751 = vunpack.c.l.b16 %v1737
    %v1752 = vunpack.c.l.b16 %v1738
    %v1753 = vpack.c.b16 %v1750, %v1749
    %v1754 = vpack.c.b16 %v1752, %v1751
    %v1758 = vsel %vm173, %v1740, 0
    %1760 = vmatprep.subr.bf16.mxu0 0
    %1761 = vmatpush1.bf16.msra.mxu0 0
    %1762 = vmatprep.subr.bf16.mxu0 0
    %1763 = vmatpush1.bf16.msra.mxu0 0
    %1764 = vmatprep.subr.bf16.mxu0 0
    %1765 = vmatpush1.bf16.msra.mxu0 0
    %1766 = vmatprep.subr.bf16.mxu0 0
    %1767 = vmatpush1.bf16.msra.mxu0 0
    %1768 = vmatprep.subr.bf16.mxu0 0
    %1769 = vmatpush1.bf16.msra.mxu0 0
    %1770 = vmatprep.subr.bf16.mxu0 0
    %1771 = vmatpush1.bf16.msra.mxu0 0
    %1772 = vmatprep.subr.bf16.mxu0 0
    %1773 = vmatpush1.bf16.msra.mxu0 %v1754
    %1774 = vmatprep.subr.bf16.mxu0 0
    %1775 = vmatpush1.bf16.msra.mxu0 %v1753
    %1776 = vmatprep.subr.bf16.mxu0 0
    %1777 = vmatpush2.bf16.msra.mxu0 0
    %1778 = vmatprep.subr.bf16.mxu0 0
    %1779 = vmatpush2.bf16.msra.mxu0 0
    %1780 = vmatprep.subr.bf16.mxu0 0
    %1781 = vmatpush2.bf16.msra.mxu0 0
    %1782 = vmatprep.subr.bf16.mxu0 0
    %1783 = vmatpush2.bf16.msra.mxu0 0
    %1784 = vmatprep.subr.bf16.mxu0 0
    %1785 = vmatpush2.bf16.msra.mxu0 0
    %1786 = vmatprep.subr.bf16.mxu0 0
    %1787 = vmatpush2.bf16.msra.mxu0 0
    %1788 = vmatprep.subr.bf16.mxu0 0
    %1789 = vmatpush2.bf16.msra.mxu0 0
    %1790 = vmatprep.subr.bf16.mxu0 0
    %1791 = vmatpush2.bf16.msra.mxu0 0
    %1792 = vmatprep.mubr.bf16.mxu0 0
    %1793 = vmatmul.mubr.bf16.gmra.mxu0 %v1758
    %v1794 = vpop.f32.mrf.mxu0
    %v1795 = vadd.f32 %v1744, %v1794
    %v1796 = vpop.f32.mrf.mxu0
    %v1797 = vpop.f32.mrf.mxu0
    %v1798 = vpop.f32.mrf.mxu0
    %1799 = vdwg.mxu0
    %v1800 = vmax.f32 %v1795, 0.0
    %v1801 = vld [vmem:[#allocation2 + $0xc0] sm:$0xf]
    %v1802 = vld [vmem:[#allocation2 + $0xc4] sm:$0xf]
    %v1803 = vld [vmem:[#allocation5 + $0x1c] sm:$0x1]
    %v1804 = vpack.c.bf16 %v1800, %v1800
    %v1805 = vlaneseq
    %v1806 = vshrl.u32 %v1805, 7
    %v1807 = vsub.s32 0, %v1806
    %v1808 = vrot.slane %v1803, %v1807
    %v1811 = vunpack.c.l.b16 %v1801
    %v1812 = vunpack.c.l.b16 %v1802
    %v1813 = vpack.c.b16 %v1812, %v1811
    %vm1815 = vcmask 130048
    %v1817 = vsel %vm1815, %v1804, 0
    %1819 = vmatprep.subr.bf16.mxu0 0
    %1820 = vmatpush1.bf16.msra.mxu0 0
    %1821 = vmatprep.subr.bf16.mxu0 0
    %1822 = vmatpush1.bf16.msra.mxu0 0
    %1823 = vmatprep.subr.bf16.mxu0 0
    %1824 = vmatpush1.bf16.msra.mxu0 0
    %1825 = vmatprep.subr.bf16.mxu0 0
    %1826 = vmatpush1.bf16.msra.mxu0 0
    %1827 = vmatprep.subr.bf16.mxu0 0
    %1828 = vmatpush1.bf16.msra.mxu0 0
    %1829 = vmatprep.subr.bf16.mxu0 0
    %1830 = vmatpush1.bf16.msra.mxu0 0
    %1831 = vmatprep.subr.bf16.mxu0 0
    %1832 = vmatpush1.bf16.msra.mxu0 0
    %1833 = vmatprep.subr.bf16.mxu0 0
    %1834 = vmatpush1.bf16.msra.mxu0 %v1813
    %1835 = vmatprep.subr.bf16.mxu0 0
    %1836 = vmatpush2.bf16.msra.mxu0 0
    %1837 = vmatprep.subr.bf16.mxu0 0
    %1838 = vmatpush2.bf16.msra.mxu0 0
    %1839 = vmatprep.subr.bf16.mxu0 0
    %1840 = vmatpush2.bf16.msra.mxu0 0
    %1841 = vmatprep.subr.bf16.mxu0 0
    %1842 = vmatpush2.bf16.msra.mxu0 0
    %1843 = vmatprep.subr.bf16.mxu0 0
    %1844 = vmatpush2.bf16.msra.mxu0 0
    %1845 = vmatprep.subr.bf16.mxu0 0
    %1846 = vmatpush2.bf16.msra.mxu0 0
    %1847 = vmatprep.subr.bf16.mxu0 0
    %1848 = vmatpush2.bf16.msra.mxu0 0
    %1849 = vmatprep.subr.bf16.mxu0 0
    %1850 = vmatpush2.bf16.msra.mxu0 0
    %1851 = vmatprep.mubr.bf16.mxu0 0
    %1852 = vmatmul.mubr.bf16.gmra.mxu0 %v1817
    %v1853 = vpop.f32.mrf.mxu0
    %v1854 = vadd.f32 %v1808, %v1853
    %v1855 = vpop.f32.mrf.mxu0
    %v1856 = vpop.f32.mrf.mxu0
    %v1857 = vpop.f32.mrf.mxu0
    %1858 = vdwg.mxu0
    %vm1859 = vcmask 25600
    %v1860 = vsel %vm1859, %v1854, -inf
    %1861 = vmax.xlane.f32.xlu0 %v1860
    %v1862 = vpop.xlane.xlu0 %1861
    %v1863 = vsub.f32 %v1854, %v1862
    %v1864 = vmul.f32 %v1863, 1.442695
    %v1865 = vpow.pop %v1864
    %v1866 = vsel %vm1859, %v1865, 0.0
    %1867 = vadd.xlane.f32.xlu0 %v1866
    %v1868 = vpop.xlane.xlu0 %1867
    %v1869 = vrcp.pop %v1868
    %v1870 = vmul.f32 %v1865, %v1869
    %1871 = vst.msk [vmem:[#allocation7] sm:$0x3] %vm1859, %v1870
    // Predicated region
    $region26: #{bert_based_model_forward.1} parent=1 // pred_check
      _
    $region27: #{bert_based_model_forward.1} parent=1 // pred_check_branch
      %1873 = sbr.rel (0) target = $region29
    $region28: #{bert_based_model_forward.1} parent=1 // pred_region
      %s1875 = ssub.s32 32, 32
      %1876 = vsyncadd [#allocation4], %s1875
      %s1878 = sshll.u32 [#allocation7], 4
      %s1879 = int_to_ptr.vmem [resolvable:$true] %s1878
      %1881 = dma.vmem_to_hbm [thread:$0]  %s1879, 32, %s4, [#allocation4]
    $region29: #{bert_based_model_forward.1} parent=1 // pred_fallthru
      _
    // Predicated region
    $region30: #{bert_based_model_forward.1} parent=1 // pred_check
      _
    $region31: #{bert_based_model_forward.1} parent=1 // pred_check_branch
      %1883 = sbr.rel (0) target = $region33
    $region32: #{bert_based_model_forward.1} parent=1 // pred_region
      %1884 = dma.done [#allocation4], 32
    $region33: #{bert_based_model_forward.1} parent=1 // pred_fallthru
      _
    %1885 = vsyncpa [#allocation3], 1
    %1886 = vsyncpa [#allocation6], 1
    %1887 = vsyncpa [#allocation4], 1

</llo_original>
